<compile_context>
chip_gen: v7x
topology: tpu7x:2x2x1
jax: 0.10.0
libtpu: 0.0.40
codegen_flags: <defaults>
</compile_context>

<pallas_src>
import functools
import math

import jax
import jax.numpy as jnp
from jax import lax
from jax.experimental import pallas as pl
from jax.experimental.pallas import tpu as pltpu


def _mha_kernel(valid_lens_ref,                      # SMEM (B,) int32 (scalar prefetch)
                q_ref, k_ref, v_ref,                 # (1,tile_q,Dq), (1,Tk,Dk), (1,Tk,Dv)
                wq_ref, wk_ref, wv_ref, wo_ref,      # weights (grid-invariant, VMEM-resident)
                o_ref,                               # (1, tile_q, H)
                kt_sc, v_sc, ctx_sc,                 # VMEM scratch: (H,Tk), (Tk,H), (tile_q,H)
                *, num_heads, scale):
    b = pl.program_id(0)
    qi = pl.program_id(1)

    # ---- K / V projection: once per batch element, cached across query tiles.
    # The qi grid axis is "arbitrary", so this scratch legally persists.
    @pl.when(qi == 0)
    def _():
        K = jnp.dot(k_ref[0], wk_ref[...], preferred_element_type=jnp.float32)   # (Tk, H)
        V = jnp.dot(v_ref[0], wv_ref[...], preferred_element_type=jnp.float32)   # (Tk, H)
        kt_sc[...] = K.T.astype(kt_sc.dtype)   # one XLU transpose per batch element
        v_sc[...] = V.astype(v_sc.dtype)

    vl = valid_lens_ref[b]                           # per-sequence valid key length (scalar)

    # Q projection; the 1/sqrt(head_dim) scale is folded in once here.
    Q = jnp.dot(q_ref[0], wq_ref[...], preferred_element_type=jnp.float32) * scale
    Q = Q.astype(ctx_sc.dtype)                       # native-width MXU operand

    tile_q, H = Q.shape
    Tk = v_sc.shape[0]
    head_dim = H // num_heads

    # Key-position mask shared by all heads; hoisted out of the head loop.
    key_ids = lax.broadcasted_iota(jnp.int32, (tile_q, Tk), 1)
    key_mask = key_ids < vl

    # TODO(synk): for very large num_heads, switch to lax.fori_loop(..., unroll=k)
    # over pl.ds head slices to bound vreg live ranges.
    for h in range(num_heads):
        sl = slice(h * head_dim, (h + 1) * head_dim)
        # scores from the cached, pre-transposed K^T (no per-tile RHS transpose).
        scores = jnp.dot(Q[:, sl], kt_sc[sl, :],
                         preferred_element_type=jnp.float32)                     # (tile_q, Tk)
        # masked_softmax: masked positions -> -1e6 (matches the torch code).
        scores = jnp.where(key_mask, scores, -1e6)
        m = jnp.max(scores, axis=-1, keepdims=True)
        p = jnp.exp(scores - m)                                                  # f32 softmax math
        l = jnp.sum(p, axis=-1, keepdims=True)
        attn = p * pl.reciprocal(l, approx=True)                                 # EUP slot
        # (dropout is identity at inference)
        ctx_sc[:, sl] = jnp.dot(attn.astype(v_sc.dtype), v_sc[:, sl],
                                preferred_element_type=jnp.float32).astype(ctx_sc.dtype)

    # Single full-contraction W_o matmul (transpose_output + W_o).
    out = jnp.dot(ctx_sc[...], wo_ref[...], preferred_element_type=jnp.float32)
    o_ref[0] = out.astype(o_ref.dtype)


def mha_forward(queries, keys, values, valid_lens, params, *, num_heads, tile_q=128):
    """Pallas implementation of MultiHeadAttention.forward (inference, dropout = identity).

    queries: (B, Tq, query_size); keys: (B, Tk, key_size); values: (B, Tk, value_size)
    valid_lens: (B,) int32 per-sequence valid key length, or None (=> all keys valid)
    params: (W_q, W_k, W_v, W_o) with shapes (Dq,H), (Dk,H), (Dv,H), (H,H)  [bias=False]
    returns: (B, Tq, num_hiddens)
    """
    wq, wk, wv, wo = params
    B, Tq, Dq = queries.shape
    _, Tk, Dk = keys.shape
    Dv = values.shape[-1]
    H = wq.shape[1]
    assert H % num_heads == 0
    head_dim = H // num_heads
    scale = 1.0 / math.sqrt(head_dim)

    if valid_lens is None:
        # TODO(synk): d2l's masked_softmax(None) path softmaxes over dim=1 (a quirk of the
        # original); here "no mask" means standard softmax over the key axis (all keys valid).
        valid_lens = jnp.full((B,), Tk, dtype=jnp.int32)
    # TODO(synk): 2-D (per-query) valid_lens not implemented; only the common 1-D path.
    valid_lens = valid_lens.astype(jnp.int32)

    cdt = queries.dtype
    # Query row tile: dtype-aware sublane multiple (f32: 8, bf16: 16, int8/fp8: 32);
    # pad Tq so the grid is cdiv-clean (no hard divisibility assert).
    sub = max(8, 32 // jnp.dtype(cdt).itemsize)
    tile_q = max(sub, min(tile_q, ((Tq + sub - 1) // sub) * sub))
    tile_q = ((tile_q + sub - 1) // sub) * sub
    Tq_pad = ((Tq + tile_q - 1) // tile_q) * tile_q
    if Tq_pad != Tq:
        queries = jnp.pad(queries, ((0, 0), (0, Tq_pad - Tq), (0, 0)))

    grid = (B, Tq_pad // tile_q)
    kernel = functools.partial(_mha_kernel, num_heads=num_heads, scale=scale)

    out = pl.pallas_call(
        kernel,
        out_shape=jax.ShapeDtypeStruct((B, Tq_pad, H), cdt),
        grid_spec=pltpu.PrefetchScalarGridSpec(
            num_scalar_prefetch=1,            # valid_lens -> SMEM
            grid=grid,
            in_specs=[
                pl.BlockSpec((1, tile_q, Dq), lambda b, qi, vl: (b, qi, 0)),   # query tile
                pl.BlockSpec((1, Tk, Dk),     lambda b, qi, vl: (b, 0, 0)),    # keys (full seq)
                pl.BlockSpec((1, Tk, Dv),     lambda b, qi, vl: (b, 0, 0)),    # values (full seq)
                pl.BlockSpec((Dq, H),         lambda b, qi, vl: (0, 0)),       # W_q (resident)
                pl.BlockSpec((Dk, H),         lambda b, qi, vl: (0, 0)),       # W_k
                pl.BlockSpec((Dv, H),         lambda b, qi, vl: (0, 0)),       # W_v
                pl.BlockSpec((H, H),          lambda b, qi, vl: (0, 0)),       # W_o
            ],
            out_specs=pl.BlockSpec((1, tile_q, H), lambda b, qi, vl: (b, qi, 0)),
            scratch_shapes=[
                pltpu.VMEM((H, Tk), cdt),        # cached K^T (projected, pre-transposed)
                pltpu.VMEM((Tk, H), cdt),        # cached projected V
                pltpu.VMEM((tile_q, H), cdt),    # per-head context concat buffer
            ],
        ),
        compiler_params=pltpu.CompilerParams(
            # batch axis parallel (v7x megacore); query-tile axis arbitrary so the
            # cached K^T / V scratch persists across qi steps of the same batch.
            dimension_semantics=("parallel", "arbitrary"),
            vmem_limit_bytes=64 * 1024 * 1024,
        ),
    )(valid_lens, queries, keys, values, wq, wk, wv, wo)

    return out[:, :Tq, :]


def mha_reference(queries, keys, values, valid_lens, params, num_heads):
    """Pure-JAX reference (mirrors the PyTorch module) for correctness checking."""
    wq, wk, wv, wo = params
    B, Tq, _ = queries.shape
    Tk = keys.shape[1]
    H = wq.shape[1]
    hd = H // num_heads
    hp = jax.lax.Precision.HIGHEST
    Q = jnp.dot(queries, wq, precision=hp).reshape(B, Tq, num_heads, hd).transpose(0, 2, 1, 3)
    K = jnp.dot(keys, wk, precision=hp).reshape(B, Tk, num_heads, hd).transpose(0, 2, 1, 3)
    V = jnp.dot(values, wv, precision=hp).reshape(B, Tk, num_heads, hd).transpose(0, 2, 1, 3)
    scores = jnp.einsum("bhqd,bhkd->bhqk", Q, K, precision=hp) / math.sqrt(hd)
    if valid_lens is not None:
        mask = jnp.arange(Tk)[None, None, None, :] < valid_lens[:, None, None, None]
        scores = jnp.where(mask, scores, -1e6)
    attn = jax.nn.softmax(scores, axis=-1)
    ctx = jnp.einsum("bhqk,bhkd->bhqd", attn, V, precision=hp)
    ctx = ctx.transpose(0, 2, 1, 3).reshape(B, Tq, H)
    return jnp.dot(ctx, wo, precision=hp)


def init_params(key, query_size, key_size, value_size, num_hiddens):
    k1, k2, k3, k4 = jax.random.split(key, 4)
    s = 0.1
    wq = jax.random.normal(k1, (query_size, num_hiddens), jnp.float32) * s
    wk = jax.random.normal(k2, (key_size, num_hiddens), jnp.float32) * s
    wv = jax.random.normal(k3, (value_size, num_hiddens), jnp.float32) * s
    wo = jax.random.normal(k4, (num_hiddens, num_hiddens), jnp.float32) * s
    return wq, wk, wv, wo


if __name__ == "__main__":
    # Small shapes consistent with the module.
    B, Tq, Tk = 2, 8, 8
    query_size = key_size = value_size = 32
    num_hiddens, num_heads = 32, 4   # head_dim = 8

    root = jax.random.PRNGKey(0)
    kq, kk, kv, kw = jax.random.split(root, 4)
    queries = jax.random.normal(kq, (B, Tq, query_size), jnp.float32)
    keys = jax.random.normal(kk, (B, Tk, key_size), jnp.float32)
    values = jax.random.normal(kv, (B, Tk, value_size), jnp.float32)
    valid_lens = jnp.array([3, 6], dtype=jnp.int32)
    params = init_params(kw, query_size, key_size, value_size, num_hiddens)

    fwd = jax.jit(functools.partial(mha_forward, num_heads=num_heads, tile_q=128))
    out = jax.block_until_ready(fwd(queries, keys, values, valid_lens, params))

    ref = mha_reference(queries, keys, values, valid_lens, params, num_heads)
    assert out.shape == (B, Tq, num_hiddens)
    err = float(jnp.max(jnp.abs(out - ref)))
    assert jnp.allclose(out, ref, atol=2e-3, rtol=2e-3), err

    print("KERNEL_OK")
</pallas_src>

<mosaic_0001>
module attributes {stable_mosaic.version = 11 : i64} {
  func.func @_mha_kernel(%arg0: i32, %arg1: i32, %arg2: memref<2xi32, #tpu.memory_space<smem>>, %arg3: memref<1x8x32xf32, #tpu.memory_space<vmem>>, %arg4: memref<1x8x32xf32, #tpu.memory_space<vmem>>, %arg5: memref<1x8x32xf32, #tpu.memory_space<vmem>>, %arg6: memref<32x32xf32, #tpu.memory_space<vmem>>, %arg7: memref<32x32xf32, #tpu.memory_space<vmem>>, %arg8: memref<32x32xf32, #tpu.memory_space<vmem>>, %arg9: memref<32x32xf32, #tpu.memory_space<vmem>>, %arg10: memref<1x8x32xf32, #tpu.memory_space<vmem>>, %arg11: memref<32x8xf32, #tpu.memory_space<vmem>>, %arg12: memref<8x32xf32, #tpu.memory_space<vmem>>, %arg13: memref<8x32xf32, #tpu.memory_space<vmem>>) attributes {dimension_semantics = [#tpu.dimension_semantics<parallel>, #tpu.dimension_semantics<arbitrary>], iteration_bounds = array<i64: 2, 1>, scalar_prefetch = 1 : i64, scratch_operands = 3 : i64, tpu.core_type = #tpu.core_type<tc>, window_params = [{transform_indices = @transform_0, window_bounds = array<i64: 1, 8, 32>}, {transform_indices = @transform_1, window_bounds = array<i64: 1, 8, 32>}, {transform_indices = @transform_2, window_bounds = array<i64: 1, 8, 32>}, {pipeline_mode = #tpu.pipeline_mode<synchronous>, transform_indices = @transform_3, window_bounds = array<i64: 32, 32>}, {pipeline_mode = #tpu.pipeline_mode<synchronous>, transform_indices = @transform_4, window_bounds = array<i64: 32, 32>}, {pipeline_mode = #tpu.pipeline_mode<synchronous>, transform_indices = @transform_5, window_bounds = array<i64: 32, 32>}, {pipeline_mode = #tpu.pipeline_mode<synchronous>, transform_indices = @transform_6, window_bounds = array<i64: 32, 32>}, {transform_indices = @transform_7, window_bounds = array<i64: 1, 8, 32>}]} {
    %c0_i32 = arith.constant 0 : i32
    %0 = arith.cmpi eq, %arg1, %c0_i32 : i32
    %1 = arith.extui %0 : i1 to i32
    %c0_i32_0 = arith.constant 0 : i32
    %2 = arith.cmpi ne, %1, %c0_i32_0 : i32
    scf.if %2 {
      %c0_55 = arith.constant 0 : index
      %c0_56 = arith.constant 0 : index
      %c0_57 = arith.constant 0 : index
      %92 = vector.load %arg4[%c0_55, %c0_56, %c0_57] : memref<1x8x32xf32, #tpu.memory_space<vmem>>, vector<1x8x32xf32>
      %93 = vector.shape_cast %92 : vector<1x8x32xf32> to vector<8x32xf32>
      %c0_58 = arith.constant 0 : index
      %c0_59 = arith.constant 0 : index
      %94 = vector.load %arg7[%c0_58, %c0_59] : memref<32x32xf32, #tpu.memory_space<vmem>>, vector<32x32xf32>
      %cst_60 = arith.constant dense<0.000000e+00> : vector<8x32xf32>
      %95 = tpu.matmul %93, %94, %cst_60 {dimension_numbers = #tpu.dot_dimension_numbers<[1], [0], [0], [1], [0, 0, 1, 1], [], []>} : vector<8x32xf32>, vector<32x32xf32>, vector<8x32xf32> -> vector<8x32xf32>
      %c0_61 = arith.constant 0 : index
      %c0_62 = arith.constant 0 : index
      %c0_63 = arith.constant 0 : index
      %96 = vector.load %arg5[%c0_61, %c0_62, %c0_63] : memref<1x8x32xf32, #tpu.memory_space<vmem>>, vector<1x8x32xf32>
      %97 = vector.shape_cast %96 : vector<1x8x32xf32> to vector<8x32xf32>
      %c0_64 = arith.constant 0 : index
      %c0_65 = arith.constant 0 : index
      %98 = vector.load %arg8[%c0_64, %c0_65] : memref<32x32xf32, #tpu.memory_space<vmem>>, vector<32x32xf32>
      %cst_66 = arith.constant dense<0.000000e+00> : vector<8x32xf32>
      %99 = tpu.matmul %97, %98, %cst_66 {dimension_numbers = #tpu.dot_dimension_numbers<[1], [0], [0], [1], [0, 0, 1, 1], [], []>} : vector<8x32xf32>, vector<32x32xf32>, vector<8x32xf32> -> vector<8x32xf32>
      %100 = tpu.transpose %95, [1, 0] : vector<8x32xf32> -> vector<32x8xf32>
      %c0_67 = arith.constant 0 : index
      %c0_68 = arith.constant 0 : index
      %101 = vector.load %arg11[%c0_67, %c0_68] : memref<32x8xf32, #tpu.memory_space<vmem>>, vector<32x8xf32>
      tpu.vector_store %arg11[%c0_67, %c0_68], %100 {strides = array<i32>} : memref<32x8xf32, #tpu.memory_space<vmem>>, vector<32x8xf32>,
      %c0_69 = arith.constant 0 : index
      %c0_70 = arith.constant 0 : index
      %102 = vector.load %arg12[%c0_69, %c0_70] : memref<8x32xf32, #tpu.memory_space<vmem>>, vector<8x32xf32>
      tpu.vector_store %arg12[%c0_69, %c0_70], %99 {strides = array<i32>} : memref<8x32xf32, #tpu.memory_space<vmem>>, vector<8x32xf32>,
    } else {
    }
    %3 = arith.index_cast %arg0 : i32 to index
    %4 = memref.load %arg2[%3] : memref<2xi32, #tpu.memory_space<smem>>
    %c0 = arith.constant 0 : index
    %c0_1 = arith.constant 0 : index
    %c0_2 = arith.constant 0 : index
    %5 = vector.load %arg3[%c0, %c0_1, %c0_2] : memref<1x8x32xf32, #tpu.memory_space<vmem>>, vector<1x8x32xf32>
    %6 = vector.shape_cast %5 : vector<1x8x32xf32> to vector<8x32xf32>
    %c0_3 = arith.constant 0 : index
    %c0_4 = arith.constant 0 : index
    %7 = vector.load %arg6[%c0_3, %c0_4] : memref<32x32xf32, #tpu.memory_space<vmem>>, vector<32x32xf32>
    %cst = arith.constant dense<0.000000e+00> : vector<8x32xf32>
    %8 = tpu.matmul %6, %7, %cst {dimension_numbers = #tpu.dot_dimension_numbers<[1], [0], [0], [1], [0, 0, 1, 1], [], []>} : vector<8x32xf32>, vector<32x32xf32>, vector<8x32xf32> -> vector<8x32xf32>
    %cst_5 = arith.constant 0.353553385 : f32
    %9 = vector.broadcast %cst_5 : f32 to vector<8x32xf32>
    %10 = arith.mulf %8, %9 : vector<8x32xf32>
    %11 = tpu.iota {dimensions = array<i32: 1>} : vector<8x8xi32>
    %12 = vector.broadcast %4 : i32 to vector<8x8xi32>
    %13 = arith.cmpi slt, %11, %12 : vector<8x8xi32>
    %14 = vector.extract_strided_slice %10 {offsets = [0, 0], sizes = [8, 8], strides = [1, 1]} : vector<8x32xf32> to vector<8x8xf32>
    %c0_6 = arith.constant 0 : index
    %c0_7 = arith.constant 0 : index
    %15 = vector.load %arg11[%c0_6, %c0_7] : memref<32x8xf32, #tpu.memory_space<vmem>>, vector<8x8xf32>
    %cst_8 = arith.constant dense<0.000000e+00> : vector<8x8xf32>
    %16 = tpu.matmul %14, %15, %cst_8 {dimension_numbers = #tpu.dot_dimension_numbers<[1], [0], [0], [1], [0, 0, 1, 1], [], []>} : vector<8x8xf32>, vector<8x8xf32>, vector<8x8xf32> -> vector<8x8xf32>
    %cst_9 = arith.constant -1.000000e+06 : f32
    %17 = vector.broadcast %cst_9 : f32 to vector<8x8xf32>
    %18 = arith.select %13, %16, %17 : vector<8x8xi1>, vector<8x8xf32>
    %cst_10 = arith.constant dense<0xFF800000> : vector<8xf32>
    %19 = vector.multi_reduction <maximumf>, %18, %cst_10 [1] : vector<8x8xf32> to vector<8xf32>
    %20 = vector.shape_cast %19 : vector<8xf32> to vector<8x1xf32>
    %21 = vector.broadcast %20 : vector<8x1xf32> to vector<8x8xf32>
    %22 = arith.subf %18, %21 : vector<8x8xf32>
    %23 = math.exp %22 : vector<8x8xf32>
    %cst_11 = arith.constant dense<0.000000e+00> : vector<8xf32>
    %24 = vector.multi_reduction <add>, %23, %cst_11 [1] : vector<8x8xf32> to vector<8xf32>
    %25 = vector.shape_cast %24 : vector<8xf32> to vector<8x1xf32>
    %26 = tpu.reciprocal %25 {approx = true} : vector<8x1xf32> -> vector<8x1xf32>
    %27 = vector.broadcast %26 : vector<8x1xf32> to vector<8x8xf32>
    %28 = arith.mulf %23, %27 : vector<8x8xf32>
    %c0_12 = arith.constant 0 : index
    %c0_13 = arith.constant 0 : index
    %29 = vector.load %arg12[%c0_12, %c0_13] : memref<8x32xf32, #tpu.memory_space<vmem>>, vector<8x8xf32>
    %cst_14 = arith.constant dense<0.000000e+00> : vector<8x8xf32>
    %30 = tpu.matmul %28, %29, %cst_14 {dimension_numbers = #tpu.dot_dimension_numbers<[1], [0], [0], [1], [0, 0, 1, 1], [], []>} : vector<8x8xf32>, vector<8x8xf32>, vector<8x8xf32> -> vector<8x8xf32>
    %c0_15 = arith.constant 0 : index
    %c0_16 = arith.constant 0 : index
    %31 = vector.load %arg13[%c0_15, %c0_16] : memref<8x32xf32, #tpu.memory_space<vmem>>, vector<8x8xf32>
    tpu.vector_store %arg13[%c0_15, %c0_16], %30 {strides = array<i32>} : memref<8x32xf32, #tpu.memory_space<vmem>>, vector<8x8xf32>,
    %32 = vector.extract_strided_slice %10 {offsets = [0, 8], sizes = [8, 8], strides = [1, 1]} : vector<8x32xf32> to vector<8x8xf32>
    %c8 = arith.constant 8 : index
    %c0_17 = arith.constant 0 : index
    %33 = vector.load %arg11[%c8, %c0_17] : memref<32x8xf32, #tpu.memory_space<vmem>>, vector<8x8xf32>
    %cst_18 = arith.constant dense<0.000000e+00> : vector<8x8xf32>
    %34 = tpu.matmul %32, %33, %cst_18 {dimension_numbers = #tpu.dot_dimension_numbers<[1], [0], [0], [1], [0, 0, 1, 1], [], []>} : vector<8x8xf32>, vector<8x8xf32>, vector<8x8xf32> -> vector<8x8xf32>
    %cst_19 = arith.constant -1.000000e+06 : f32
    %35 = vector.broadcast %cst_19 : f32 to vector<8x8xf32>
    %36 = arith.select %13, %34, %35 : vector<8x8xi1>, vector<8x8xf32>
    %cst_20 = arith.constant dense<0xFF800000> : vector<8xf32>
    %37 = vector.multi_reduction <maximumf>, %36, %cst_20 [1] : vector<8x8xf32> to vector<8xf32>
    %38 = vector.shape_cast %37 : vector<8xf32> to vector<8x1xf32>
    %39 = vector.broadcast %38 : vector<8x1xf32> to vector<8x8xf32>
    %40 = arith.subf %36, %39 : vector<8x8xf32>
    %41 = math.exp %40 : vector<8x8xf32>
    %cst_21 = arith.constant dense<0.000000e+00> : vector<8xf32>
    %42 = vector.multi_reduction <add>, %41, %cst_21 [1] : vector<8x8xf32> to vector<8xf32>
    %43 = vector.shape_cast %42 : vector<8xf32> to vector<8x1xf32>
    %44 = tpu.reciprocal %43 {approx = true} : vector<8x1xf32> -> vector<8x1xf32>
    %45 = vector.broadcast %44 : vector<8x1xf32> to vector<8x8xf32>
    %46 = arith.mulf %41, %45 : vector<8x8xf32>
    %c0_22 = arith.constant 0 : index
    %c8_23 = arith.constant 8 : index
    %47 = vector.load %arg12[%c0_22, %c8_23] : memref<8x32xf32, #tpu.memory_space<vmem>>, vector<8x8xf32>
    %cst_24 = arith.constant dense<0.000000e+00> : vector<8x8xf32>
    %48 = tpu.matmul %46, %47, %cst_24 {dimension_numbers = #tpu.dot_dimension_numbers<[1], [0], [0], [1], [0, 0, 1, 1], [], []>} : vector<8x8xf32>, vector<8x8xf32>, vector<8x8xf32> -> vector<8x8xf32>
    %c0_25 = arith.constant 0 : index
    %c8_26 = arith.constant 8 : index
    %49 = vector.load %arg13[%c0_25, %c8_26] : memref<8x32xf32, #tpu.memory_space<vmem>>, vector<8x8xf32>
    tpu.vector_store %arg13[%c0_25, %c8_26], %48 {strides = array<i32>} : memref<8x32xf32, #tpu.memory_space<vmem>>, vector<8x8xf32>,
    %50 = vector.extract_strided_slice %10 {offsets = [0, 16], sizes = [8, 8], strides = [1, 1]} : vector<8x32xf32> to vector<8x8xf32>
    %c16 = arith.constant 16 : index
    %c0_27 = arith.constant 0 : index
    %51 = vector.load %arg11[%c16, %c0_27] : memref<32x8xf32, #tpu.memory_space<vmem>>, vector<8x8xf32>
    %cst_28 = arith.constant dense<0.000000e+00> : vector<8x8xf32>
    %52 = tpu.matmul %50, %51, %cst_28 {dimension_numbers = #tpu.dot_dimension_numbers<[1], [0], [0], [1], [0, 0, 1, 1], [], []>} : vector<8x8xf32>, vector<8x8xf32>, vector<8x8xf32> -> vector<8x8xf32>
    %cst_29 = arith.constant -1.000000e+06 : f32
    %53 = vector.broadcast %cst_29 : f32 to vector<8x8xf32>
    %54 = arith.select %13, %52, %53 : vector<8x8xi1>, vector<8x8xf32>
    %cst_30 = arith.constant dense<0xFF800000> : vector<8xf32>
    %55 = vector.multi_reduction <maximumf>, %54, %cst_30 [1] : vector<8x8xf32> to vector<8xf32>
    %56 = vector.shape_cast %55 : vector<8xf32> to vector<8x1xf32>
    %57 = vector.broadcast %56 : vector<8x1xf32> to vector<8x8xf32>
    %58 = arith.subf %54, %57 : vector<8x8xf32>
    %59 = math.exp %58 : vector<8x8xf32>
    %cst_31 = arith.constant dense<0.000000e+00> : vector<8xf32>
    %60 = vector.multi_reduction <add>, %59, %cst_31 [1] : vector<8x8xf32> to vector<8xf32>
    %61 = vector.shape_cast %60 : vector<8xf32> to vector<8x1xf32>
    %62 = tpu.reciprocal %61 {approx = true} : vector<8x1xf32> -> vector<8x1xf32>
    %63 = vector.broadcast %62 : vector<8x1xf32> to vector<8x8xf32>
    %64 = arith.mulf %59, %63 : vector<8x8xf32>
    %c0_32 = arith.constant 0 : index
    %c16_33 = arith.constant 16 : index
    %65 = vector.load %arg12[%c0_32, %c16_33] : memref<8x32xf32, #tpu.memory_space<vmem>>, vector<8x8xf32>
    %cst_34 = arith.constant dense<0.000000e+00> : vector<8x8xf32>
    %66 = tpu.matmul %64, %65, %cst_34 {dimension_numbers = #tpu.dot_dimension_numbers<[1], [0], [0], [1], [0, 0, 1, 1], [], []>} : vector<8x8xf32>, vector<8x8xf32>, vector<8x8xf32> -> vector<8x8xf32>
    %c0_35 = arith.constant 0 : index
    %c16_36 = arith.constant 16 : index
    %67 = vector.load %arg13[%c0_35, %c16_36] : memref<8x32xf32, #tpu.memory_space<vmem>>, vector<8x8xf32>
    tpu.vector_store %arg13[%c0_35, %c16_36], %66 {strides = array<i32>} : memref<8x32xf32, #tpu.memory_space<vmem>>, vector<8x8xf32>,
    %68 = vector.extract_strided_slice %10 {offsets = [0, 24], sizes = [8, 8], strides = [1, 1]} : vector<8x32xf32> to vector<8x8xf32>
    %c24 = arith.constant 24 : index
    %c0_37 = arith.constant 0 : index
    %69 = vector.load %arg11[%c24, %c0_37] : memref<32x8xf32, #tpu.memory_space<vmem>>, vector<8x8xf32>
    %cst_38 = arith.constant dense<0.000000e+00> : vector<8x8xf32>
    %70 = tpu.matmul %68, %69, %cst_38 {dimension_numbers = #tpu.dot_dimension_numbers<[1], [0], [0], [1], [0, 0, 1, 1], [], []>} : vector<8x8xf32>, vector<8x8xf32>, vector<8x8xf32> -> vector<8x8xf32>
    %cst_39 = arith.constant -1.000000e+06 : f32
    %71 = vector.broadcast %cst_39 : f32 to vector<8x8xf32>
    %72 = arith.select %13, %70, %71 : vector<8x8xi1>, vector<8x8xf32>
    %cst_40 = arith.constant dense<0xFF800000> : vector<8xf32>
    %73 = vector.multi_reduction <maximumf>, %72, %cst_40 [1] : vector<8x8xf32> to vector<8xf32>
    %74 = vector.shape_cast %73 : vector<8xf32> to vector<8x1xf32>
    %75 = vector.broadcast %74 : vector<8x1xf32> to vector<8x8xf32>
    %76 = arith.subf %72, %75 : vector<8x8xf32>
    %77 = math.exp %76 : vector<8x8xf32>
    %cst_41 = arith.constant dense<0.000000e+00> : vector<8xf32>
    %78 = vector.multi_reduction <add>, %77, %cst_41 [1] : vector<8x8xf32> to vector<8xf32>
    %79 = vector.shape_cast %78 : vector<8xf32> to vector<8x1xf32>
    %80 = tpu.reciprocal %79 {approx = true} : vector<8x1xf32> -> vector<8x1xf32>
    %81 = vector.broadcast %80 : vector<8x1xf32> to vector<8x8xf32>
    %82 = arith.mulf %77, %81 : vector<8x8xf32>
    %c0_42 = arith.constant 0 : index
    %c24_43 = arith.constant 24 : index
    %83 = vector.load %arg12[%c0_42, %c24_43] : memref<8x32xf32, #tpu.memory_space<vmem>>, vector<8x8xf32>
    %cst_44 = arith.constant dense<0.000000e+00> : vector<8x8xf32>
    %84 = tpu.matmul %82, %83, %cst_44 {dimension_numbers = #tpu.dot_dimension_numbers<[1], [0], [0], [1], [0, 0, 1, 1], [], []>} : vector<8x8xf32>, vector<8x8xf32>, vector<8x8xf32> -> vector<8x8xf32>
    %c0_45 = arith.constant 0 : index
    %c24_46 = arith.constant 24 : index
    %85 = vector.load %arg13[%c0_45, %c24_46] : memref<8x32xf32, #tpu.memory_space<vmem>>, vector<8x8xf32>
    tpu.vector_store %arg13[%c0_45, %c24_46], %84 {strides = array<i32>} : memref<8x32xf32, #tpu.memory_space<vmem>>, vector<8x8xf32>,
    %c0_47 = arith.constant 0 : index
    %c0_48 = arith.constant 0 : index
    %86 = vector.load %arg13[%c0_47, %c0_48] : memref<8x32xf32, #tpu.memory_space<vmem>>, vector<8x32xf32>
    %c0_49 = arith.constant 0 : index
    %c0_50 = arith.constant 0 : index
    %87 = vector.load %arg9[%c0_49, %c0_50] : memref<32x32xf32, #tpu.memory_space<vmem>>, vector<32x32xf32>
    %cst_51 = arith.constant dense<0.000000e+00> : vector<8x32xf32>
    %88 = tpu.matmul %86, %87, %cst_51 {dimension_numbers = #tpu.dot_dimension_numbers<[1], [0], [0], [1], [0, 0, 1, 1], [], []>} : vector<8x32xf32>, vector<32x32xf32>, vector<8x32xf32> -> vector<8x32xf32>
    %c0_52 = arith.constant 0 : index
    %c0_53 = arith.constant 0 : index
    %c0_54 = arith.constant 0 : index
    %89 = vector.load %arg10[%c0_52, %c0_53, %c0_54] : memref<1x8x32xf32, #tpu.memory_space<vmem>>, vector<1x8x32xf32>
    %90 = vector.shape_cast %89 : vector<1x8x32xf32> to vector<8x32xf32>
    %91 = vector.shape_cast %88 : vector<8x32xf32> to vector<1x8x32xf32>
    tpu.vector_store %arg10[%c0_52, %c0_53, %c0_54], %91 {strides = array<i32>} : memref<1x8x32xf32, #tpu.memory_space<vmem>>, vector<1x8x32xf32>,
    return
  }
  func.func @transform_0(%arg0: i32, %arg1: i32, %arg2: memref<2xi32, #tpu.memory_space<smem>>) -> (i32, i32, i32) {
    %c0_i32 = arith.constant 0 : i32
    %c0_i32_0 = arith.constant 0 : i32
    return %arg0, %arg1, %c0_i32 : i32, i32, i32
  }
  func.func @transform_1(%arg0: i32, %arg1: i32, %arg2: memref<2xi32, #tpu.memory_space<smem>>) -> (i32, i32, i32) {
    %c0_i32 = arith.constant 0 : i32
    %c0_i32_0 = arith.constant 0 : i32
    %c0_i32_1 = arith.constant 0 : i32
    return %arg0, %c0_i32, %c0_i32_0 : i32, i32, i32
  }
  func.func @transform_2(%arg0: i32, %arg1: i32, %arg2: memref<2xi32, #tpu.memory_space<smem>>) -> (i32, i32, i32) {
    %c0_i32 = arith.constant 0 : i32
    %c0_i32_0 = arith.constant 0 : i32
    %c0_i32_1 = arith.constant 0 : i32
    return %arg0, %c0_i32, %c0_i32_0 : i32, i32, i32
  }
  func.func @transform_3(%arg0: i32, %arg1: i32, %arg2: memref<2xi32, #tpu.memory_space<smem>>) -> (i32, i32) {
    %c0_i32 = arith.constant 0 : i32
    %c0_i32_0 = arith.constant 0 : i32
    %c0_i32_1 = arith.constant 0 : i32
    return %c0_i32, %c0_i32_0 : i32, i32
  }
  func.func @transform_4(%arg0: i32, %arg1: i32, %arg2: memref<2xi32, #tpu.memory_space<smem>>) -> (i32, i32) {
    %c0_i32 = arith.constant 0 : i32
    %c0_i32_0 = arith.constant 0 : i32
    %c0_i32_1 = arith.constant 0 : i32
    return %c0_i32, %c0_i32_0 : i32, i32
  }
  func.func @transform_5(%arg0: i32, %arg1: i32, %arg2: memref<2xi32, #tpu.memory_space<smem>>) -> (i32, i32) {
    %c0_i32 = arith.constant 0 : i32
    %c0_i32_0 = arith.constant 0 : i32
    %c0_i32_1 = arith.constant 0 : i32
    return %c0_i32, %c0_i32_0 : i32, i32
  }
  func.func @transform_6(%arg0: i32, %arg1: i32, %arg2: memref<2xi32, #tpu.memory_space<smem>>) -> (i32, i32) {
    %c0_i32 = arith.constant 0 : i32
    %c0_i32_0 = arith.constant 0 : i32
    %c0_i32_1 = arith.constant 0 : i32
    return %c0_i32, %c0_i32_0 : i32, i32
  }
  func.func @transform_7(%arg0: i32, %arg1: i32, %arg2: memref<2xi32, #tpu.memory_space<smem>>) -> (i32, i32, i32) {
    %c0_i32 = arith.constant 0 : i32
    %c0_i32_0 = arith.constant 0 : i32
    return %arg0, %arg1, %c0_i32 : i32, i32, i32
  }
}

</mosaic_0001>

<llo_original>
// kernel: mha_forward.1
$region0: #{mha_forward.1}
  #allocation0 [shape = 'u32[]', space=smem, size = 0x4, offset = 0x4, fixed_abs, tag = 'smem constant byte address 0x4 - core index']
  #allocation1 [shape = 'u32[144,128]{1,0:T(1,128)}', space=vmem, size = 0x12000, scoped, tag = 'internal scratch']
  #allocation2 [shape = 'f32[32,8]{1,0:T(8,128)}', space=vmem, size = 0x4000, scoped, tag = 'scratch operand']
  #allocation3 [shape = 'f32[8,32]{1,0:T(8,128)}', space=vmem, size = 0x1000, scoped, tag = 'scratch operand']
  #allocation4 [shape = 'f32[8,32]{1,0:T(8,128)}', space=vmem, size = 0x1000, scoped, tag = 'scratch operand']
  #allocation5 [shape = 's32[1]{0}', space=sflag, size = 0x4, scoped, tag = 'scoped memory for mha_forward.1']
  #allocation6 [shape = 'u8[512]{0}', space=smem, size = 0x200, scoped, tag = 'prefetched SMEM operand 0']
  %s0 = inlined_call_operand.hbm [shape: s32[2], index: 0, kind: input, shape index: {}]
  %s1 = inlined_call_operand.hbm [shape: f32[2,8,32], index: 1, kind: input, shape index: {}]
  %s2 = inlined_call_operand.hbm [shape: f32[2,8,32], index: 2, kind: input, shape index: {}]
  %s3 = inlined_call_operand.hbm [shape: f32[2,8,32], index: 3, kind: input, shape index: {}]
  %s4 = inlined_call_operand.hbm [shape: f32[32,32], index: 4, kind: input, shape index: {}]
  %s5 = inlined_call_operand.hbm [shape: f32[32,32], index: 5, kind: input, shape index: {}]
  %s6 = inlined_call_operand.hbm [shape: f32[32,32], index: 6, kind: input, shape index: {}]
  %s7 = inlined_call_operand.hbm [shape: f32[32,32], index: 7, kind: input, shape index: {}]
  %s8 = inlined_call_operand.hbm [shape: f32[2,8,32], index: 8, kind: output, shape index: {}]
  %s9 = sld [smem:[#allocation0]]
  $region93: #{mha_forward.1} parent=0
    _
  %s11 = ssub.s32 1, %s9
  %s12 = scalar_select 0, %s11, %s9
  %14 = dma.hbm_to_smem %s0, 16, [#allocation6], [#allocation5]
  %15 = dma.done [#allocation5], 16
  %16 = sfence
  $region1: #{mha_forward.1} parent=0
    #allocation7 [shape = 'u8[8192]{0}', space=vmem, size = 0x2000, scoped, tag = 'input window, operand 1']
    #allocation8 [shape = 's32[2]{0}', space=sflag, size = 0x8, scoped, tag = 'scoped memory for mha_forward.1']
    #allocation9 [shape = 's32[2]{0}', space=sflag, size = 0x8, scoped, tag = 'scoped memory for mha_forward.1']
    #allocation10 [shape = 'u8[8192]{0}', space=vmem, size = 0x2000, scoped, tag = 'input window, operand 2']
    #allocation11 [shape = 's32[2]{0}', space=sflag, size = 0x8, scoped, tag = 'scoped memory for mha_forward.1']
    #allocation12 [shape = 'u8[8192]{0}', space=vmem, size = 0x2000, scoped, tag = 'input window, operand 3']
    #allocation13 [shape = 'u8[16384]{0}', space=vmem, size = 0x4000, scoped, tag = 'input window, operand 4, single buffered']
    #allocation14 [shape = 's32[1]{0}', space=sflag, size = 0x4, scoped, tag = 'scoped memory for mha_forward.1']
    #allocation15 [shape = 'u8[16384]{0}', space=vmem, size = 0x4000, scoped, tag = 'input window, operand 5, single buffered']
    #allocation16 [shape = 'u8[16384]{0}', space=vmem, size = 0x4000, scoped, tag = 'input window, operand 6, single buffered']
    #allocation17 [shape = 's32[1]{0}', space=sflag, size = 0x4, scoped, tag = 'scoped memory for mha_forward.1']
    #allocation18 [shape = 'u8[16384]{0}', space=vmem, size = 0x4000, scoped, tag = 'input window, operand 7, single buffered']
    #allocation19 [shape = 'u8[8192]{0}', space=vmem, size = 0x2000, scoped, tag = 'output window, operand 0']
    %17 = vsyncpa [#allocation8], 0
    %s18 = scalar_lea.sflag [#allocation8], 1
    %19 = vsyncpa %s18, 0
    %20 = vsyncpa [#allocation11], 0
    %s21 = scalar_lea.sflag [#allocation11], 1
    %22 = vsyncpa %s21, 0
    %23 = vsyncpa [#allocation14], 0
    %24 = vsyncpa [#allocation17], 0
    %25 = vsyncpa [#allocation9], 0
    %s26 = scalar_lea.sflag [#allocation9], 1
    %27 = vsyncpa %s26, 0
    loop: start=0, step=1, limit=4
    $region2: #{mha_forward.1} parent=1 // loop_pre_header
      _
    $region3: #{mha_forward.1} parent=1 // loop_header
      %s29 = sphi 0, %s33
      %p30 = scmp.ge.s32.totalorder %s29, 4
      %s36 = sphi 0, %s48
      %s37 = sphi 0, %s44
      %s38 = sphi 0, %s36
      %s39 = sphi 0, %s37
      %s40 = sphi 0, %s38
      %s41 = sphi 0, %s39
      %s53 = sphi 0, %s55
      %s56 = sphi 0, %s53
      %s57 = sphi 0, %s56
      %s73 = sphi 0, %s57
      %s79 = sphi 0, %s81
      %s82 = sphi 0, %s79
      %s83 = sphi 0, %s82
      %s99 = sphi 0, %s83
      %s105 = sphi 0, %s107
      %s108 = sphi 0, %s105
      %s109 = sphi 0, %s108
      %s125 = sphi 0, %s109
      %s129 = sphi 0, %s129
      %s131 = sphi 0, %s129
      %s132 = sphi 0, %s131
      %s146 = sphi 0, %s132
      %s150 = sphi 0, %s150
      %s152 = sphi 0, %s150
      %s153 = sphi 0, %s152
      %s167 = sphi 0, %s153
      %s171 = sphi 0, %s171
      %s173 = sphi 0, %s171
      %s174 = sphi 0, %s173
      %s188 = sphi 0, %s174
      %s192 = sphi 0, %s192
      %s194 = sphi 0, %s192
      %s195 = sphi 0, %s194
      %s209 = sphi 0, %s195
      %s217 = sphi 0, %s219
      %s220 = sphi 0, %s217
      %s221 = sphi 0, %s220
      %s237 = sphi 0, %s221
    $region4: #{mha_forward.1} parent=1 // loop_header_branch
      %32 = sbr.rel (%p30) target = $region8
    $region5: #{mha_forward.1} parent=1 // loop_body
      %s34 = ssub.s32 %s29, 1
      %s35 = ssub.s32 %s29, 2
      %s42 = sadd.s32 1, %s37
      %p43 = scmp.ge.s32.totalorder %s42, 1
      %s44 = scalar_select %p43, 0, %s42
      %s45 = sadd.s32 1, %s36
      %s46 = scalar_select %p43, %s45, %s36
      %p47 = scmp.ge.s32.totalorder %s46, 2
      %s48 = scalar_select %p47, 0, %s46
      %s49 = ssub.s32 %s36, %s48
      %s50 = ssub.s32 %s37, %s44
      %s51 = sor.u32 %s49, %s50
      %p52 = scmp.eq.s32.totalorder %s51, 0
      %s54 = sadd.s32 %s53, 1
      %s55 = scalar_select %p52, %s53, %s54
      %p58 = pneg %p52
      %p59 = scmp.eq.s32.totalorder %s29, 1
      %p60 = por %p58, %p59
      %p61 = scmp.ne.s32.totalorder %s53, %s56
      %p62 = scmp.eq.s32.totalorder %s29, 0
      %p63 = por %p61, %p62
      %p64 = scmp.ne.s32.totalorder %s53, %s56
      %p65 = scmp.eq.s32.totalorder %s34, 1
      %p66 = por %p64, %p65
      %p67 = scmp.ne.s32.totalorder %s56, %s57
      %p68 = scmp.eq.s32.totalorder %s34, 0
      %p69 = por %p67, %p68
      %p70 = scmp.ne.s32.totalorder %s56, %s57
      %p71 = scmp.eq.s32.totalorder %s35, 1
      %p72 = por %p70, %p71
      %p74 = scmp.ne.s32.totalorder %s57, %s73
      %p75 = scmp.eq.s32.totalorder %s35, 0
      %p76 = por %p74, %p75
      %s77 = ssub.s32 %s36, %s48
      %p78 = scmp.eq.s32.totalorder %s77, 0
      %s80 = sadd.s32 %s79, 1
      %s81 = scalar_select %p78, %s79, %s80
      %p84 = pneg %p78
      %p85 = scmp.eq.s32.totalorder %s29, 1
      %p86 = por %p84, %p85
      %p87 = scmp.ne.s32.totalorder %s79, %s82
      %p88 = scmp.eq.s32.totalorder %s29, 0
      %p89 = por %p87, %p88
      %p90 = scmp.ne.s32.totalorder %s79, %s82
      %p91 = scmp.eq.s32.totalorder %s34, 1
      %p92 = por %p90, %p91
      %p93 = scmp.ne.s32.totalorder %s82, %s83
      %p94 = scmp.eq.s32.totalorder %s34, 0
      %p95 = por %p93, %p94
      %p96 = scmp.ne.s32.totalorder %s82, %s83
      %p97 = scmp.eq.s32.totalorder %s35, 1
      %p98 = por %p96, %p97
      %p100 = scmp.ne.s32.totalorder %s83, %s99
      %p101 = scmp.eq.s32.totalorder %s35, 0
      %p102 = por %p100, %p101
      %s103 = ssub.s32 %s36, %s48
      %p104 = scmp.eq.s32.totalorder %s103, 0
      %s106 = sadd.s32 %s105, 1
      %s107 = scalar_select %p104, %s105, %s106
      %p110 = pneg %p104
      %p111 = scmp.eq.s32.totalorder %s29, 1
      %p112 = por %p110, %p111
      %p113 = scmp.ne.s32.totalorder %s105, %s108
      %p114 = scmp.eq.s32.totalorder %s29, 0
      %p115 = por %p113, %p114
      %p116 = scmp.ne.s32.totalorder %s105, %s108
      %p117 = scmp.eq.s32.totalorder %s34, 1
      %p118 = por %p116, %p117
      %p119 = scmp.ne.s32.totalorder %s108, %s109
      %p120 = scmp.eq.s32.totalorder %s34, 0
      %p121 = por %p119, %p120
      %p122 = scmp.ne.s32.totalorder %s108, %s109
      %p123 = scmp.eq.s32.totalorder %s35, 1
      %p124 = por %p122, %p123
      %p126 = scmp.ne.s32.totalorder %s109, %s125
      %p127 = scmp.eq.s32.totalorder %s35, 0
      %p128 = por %p126, %p127
      %s130 = sadd.s32 %s129, 1
      %p133 = scmp.eq.s32.totalorder %s29, 1
      %p134 = scmp.ne.s32.totalorder %s129, %s131
      %p135 = scmp.eq.s32.totalorder %s29, 0
      %p136 = por %p134, %p135
      %p137 = scmp.ne.s32.totalorder %s129, %s131
      %p138 = scmp.eq.s32.totalorder %s34, 1
      %p139 = por %p137, %p138
      %p140 = scmp.ne.s32.totalorder %s131, %s132
      %p141 = scmp.eq.s32.totalorder %s34, 0
      %p142 = por %p140, %p141
      %p143 = scmp.ne.s32.totalorder %s131, %s132
      %p144 = scmp.eq.s32.totalorder %s35, 1
      %p145 = por %p143, %p144
      %p147 = scmp.ne.s32.totalorder %s132, %s146
      %p148 = scmp.eq.s32.totalorder %s35, 0
      %p149 = por %p147, %p148
      %s151 = sadd.s32 %s150, 1
      %p154 = scmp.eq.s32.totalorder %s29, 1
      %p155 = scmp.ne.s32.totalorder %s150, %s152
      %p156 = scmp.eq.s32.totalorder %s29, 0
      %p157 = por %p155, %p156
      %p158 = scmp.ne.s32.totalorder %s150, %s152
      %p159 = scmp.eq.s32.totalorder %s34, 1
      %p160 = por %p158, %p159
      %p161 = scmp.ne.s32.totalorder %s152, %s153
      %p162 = scmp.eq.s32.totalorder %s34, 0
      %p163 = por %p161, %p162
      %p164 = scmp.ne.s32.totalorder %s152, %s153
      %p165 = scmp.eq.s32.totalorder %s35, 1
      %p166 = por %p164, %p165
      %p168 = scmp.ne.s32.totalorder %s153, %s167
      %p169 = scmp.eq.s32.totalorder %s35, 0
      %p170 = por %p168, %p169
      %s172 = sadd.s32 %s171, 1
      %p175 = scmp.eq.s32.totalorder %s29, 1
      %p176 = scmp.ne.s32.totalorder %s171, %s173
      %p177 = scmp.eq.s32.totalorder %s29, 0
      %p178 = por %p176, %p177
      %p179 = scmp.ne.s32.totalorder %s171, %s173
      %p180 = scmp.eq.s32.totalorder %s34, 1
      %p181 = por %p179, %p180
      %p182 = scmp.ne.s32.totalorder %s173, %s174
      %p183 = scmp.eq.s32.totalorder %s34, 0
      %p184 = por %p182, %p183
      %p185 = scmp.ne.s32.totalorder %s173, %s174
      %p186 = scmp.eq.s32.totalorder %s35, 1
      %p187 = por %p185, %p186
      %p189 = scmp.ne.s32.totalorder %s174, %s188
      %p190 = scmp.eq.s32.totalorder %s35, 0
      %p191 = por %p189, %p190
      %s193 = sadd.s32 %s192, 1
      %p196 = scmp.eq.s32.totalorder %s29, 1
      %p197 = scmp.ne.s32.totalorder %s192, %s194
      %p198 = scmp.eq.s32.totalorder %s29, 0
      %p199 = por %p197, %p198
      %p200 = scmp.ne.s32.totalorder %s192, %s194
      %p201 = scmp.eq.s32.totalorder %s34, 1
      %p202 = por %p200, %p201
      %p203 = scmp.ne.s32.totalorder %s194, %s195
      %p204 = scmp.eq.s32.totalorder %s34, 0
      %p205 = por %p203, %p204
      %p206 = scmp.ne.s32.totalorder %s194, %s195
      %p207 = scmp.eq.s32.totalorder %s35, 1
      %p208 = por %p206, %p207
      %p210 = scmp.ne.s32.totalorder %s195, %s209
      %p211 = scmp.eq.s32.totalorder %s35, 0
      %p212 = por %p210, %p211
      %s213 = ssub.s32 %s36, %s48
      %s214 = ssub.s32 %s37, %s44
      %s215 = sor.u32 %s213, %s214
      %p216 = scmp.eq.s32.totalorder %s215, 0
      %s218 = sadd.s32 %s217, 1
      %s219 = scalar_select %p216, %s217, %s218
      %p222 = pneg %p216
      %p223 = scmp.eq.s32.totalorder %s29, 1
      %p224 = por %p222, %p223
      %p225 = scmp.ne.s32.totalorder %s217, %s220
      %p226 = scmp.eq.s32.totalorder %s29, 0
      %p227 = por %p225, %p226
      %p228 = scmp.ne.s32.totalorder %s217, %s220
      %p229 = scmp.eq.s32.totalorder %s34, 1
      %p230 = por %p228, %p229
      %p231 = scmp.ne.s32.totalorder %s220, %s221
      %p232 = scmp.eq.s32.totalorder %s34, 0
      %p233 = por %p231, %p232
      %p234 = scmp.ne.s32.totalorder %s220, %s221
      %p235 = scmp.eq.s32.totalorder %s35, 1
      %p236 = por %p234, %p235
      %p238 = scmp.ne.s32.totalorder %s221, %s237
      %p239 = scmp.eq.s32.totalorder %s35, 0
      %p240 = por %p238, %p239
      %p241 = scmp.le.s32.totalorder 1, %s29
      %p242 = scmp.lt.s32.totalorder %s29, 3
      %p243 = pnand %p241, %p242
      %p244 = pneg %p243
      // Predicated region
      $region9: #{mha_forward.1} parent=5 // pred_check
        _
      $region10: #{mha_forward.1} parent=5 // pred_check_branch
        %246 = sbr.rel (%p243) target = $region12
      $region11: #{mha_forward.1} parent=5 // pred_region
        %s247 = ssub.s32 %s29, 1
        // Predicated region
        $region13: #{mha_forward.1} parent=11 // pred_check
          %p248 = pneg %p142
        $region14: #{mha_forward.1} parent=11 // pred_check_branch
          %250 = sbr.rel (%p248) target = $region16
        $region15: #{mha_forward.1} parent=11 // pred_region
          %s252 = ssub.s32 512, 512
          %253 = vsyncadd [#allocation14], %s252
          %s254 = sshll.u32 [#allocation13], 4
          %s255 = int_to_ptr.vmem [resolvable:$true] %s254
          %260 = dma.hbm_to_vmem [thread:$0]  %s4, 512, %s255, [#allocation14], 128, 128, 8
        $region16: #{mha_forward.1} parent=11 // pred_fallthru
          _
        // Predicated region
        $region17: #{mha_forward.1} parent=11 // pred_check
          %p261 = pneg %p163
        $region18: #{mha_forward.1} parent=11 // pred_check_branch
          %263 = sbr.rel (%p261) target = $region20
        $region19: #{mha_forward.1} parent=11 // pred_region
          %s265 = ssub.s32 512, 512
          %266 = vsyncadd [#allocation14], %s265
          %s267 = sshll.u32 [#allocation15], 4
          %s268 = int_to_ptr.vmem [resolvable:$true] %s267
          %273 = dma.hbm_to_vmem [thread:$0]  %s5, 512, %s268, [#allocation14], 128, 128, 8
        $region20: #{mha_forward.1} parent=11 // pred_fallthru
          _
        // Predicated region
        $region21: #{mha_forward.1} parent=11 // pred_check
          %p274 = pneg %p184
        $region22: #{mha_forward.1} parent=11 // pred_check_branch
          %276 = sbr.rel (%p274) target = $region24
        $region23: #{mha_forward.1} parent=11 // pred_region
          %s278 = ssub.s32 512, 512
          %279 = vsyncadd [#allocation17], %s278
          %s280 = sshll.u32 [#allocation16], 4
          %s281 = int_to_ptr.vmem [resolvable:$true] %s280
          %286 = dma.hbm_to_vmem [thread:$0]  %s6, 512, %s281, [#allocation17], 128, 128, 8
        $region24: #{mha_forward.1} parent=11 // pred_fallthru
          _
        // Predicated region
        $region25: #{mha_forward.1} parent=11 // pred_check
          %p287 = pneg %p205
        $region26: #{mha_forward.1} parent=11 // pred_check_branch
          %289 = sbr.rel (%p287) target = $region28
        $region27: #{mha_forward.1} parent=11 // pred_region
          %s291 = ssub.s32 512, 512
          %292 = vsyncadd [#allocation17], %s291
          %s293 = sshll.u32 [#allocation18], 4
          %s294 = int_to_ptr.vmem [resolvable:$true] %s293
          %299 = dma.hbm_to_vmem [thread:$0]  %s7, 512, %s294, [#allocation17], 128, 128, 8
        $region28: #{mha_forward.1} parent=11 // pred_fallthru
          _
      $region12: #{mha_forward.1} parent=5 // pred_fallthru
        _
      %p300 = scmp.lt.s32.totalorder %s29, 2
      // Predicated region
      $region29: #{mha_forward.1} parent=5 // pred_check
        %p301 = pneg %p300
      $region30: #{mha_forward.1} parent=5 // pred_check_branch
        %303 = sbr.rel (%p301) target = $region32
      $region31: #{mha_forward.1} parent=5 // pred_region
        // Predicated region
        $region33: #{mha_forward.1} parent=31 // pred_check
          %p304 = pneg %p63
        $region34: #{mha_forward.1} parent=31 // pred_check_branch
          %306 = sbr.rel (%p304) target = $region36
        $region35: #{mha_forward.1} parent=31 // pred_region
          %s307 = sand.u32 %s53, 1
          %s308 = scalar_lea.sflag [#allocation8], %s307
          %s309 = sand.u32 %s53, 1
          %s310 = smul.addr %s309, 8
          %s311 = scalar_lea.vmem [#allocation7], %s310
          %s313 = ssub.s32 128, 128
          %314 = vsyncadd %s308, %s313
          %s315 = sadd.s32 %s37, %s36
          %s316 = smul.addr %s315, 128
          %s317 = scalar_lea.hbm %s1, %s316
          %s319 = sshll.u32 %s311, 4
          %s320 = int_to_ptr.vmem [resolvable:$true] %s319
          %322 = dma.hbm_to_vmem [thread:$0]  %s317, 128, %s320, %s308
        $region36: #{mha_forward.1} parent=31 // pred_fallthru
          _
        // Predicated region
        $region37: #{mha_forward.1} parent=31 // pred_check
          %p323 = pneg %p89
        $region38: #{mha_forward.1} parent=31 // pred_check_branch
          %325 = sbr.rel (%p323) target = $region40
        $region39: #{mha_forward.1} parent=31 // pred_region
          %s326 = sand.u32 %s29, 1
          %s327 = scalar_lea.sflag [#allocation11], %s326
          %s328 = sand.u32 %s79, 1
          %s329 = smul.addr %s328, 8
          %s330 = scalar_lea.vmem [#allocation10], %s329
          %s332 = ssub.s32 128, 128
          %333 = vsyncadd %s327, %s332
          %s334 = smul.addr %s36, 128
          %s335 = scalar_lea.hbm %s2, %s334
          %s337 = sshll.u32 %s330, 4
          %s338 = int_to_ptr.vmem [resolvable:$true] %s337
          %340 = dma.hbm_to_vmem [thread:$0]  %s335, 128, %s338, %s327
        $region40: #{mha_forward.1} parent=31 // pred_fallthru
          _
        // Predicated region
        $region41: #{mha_forward.1} parent=31 // pred_check
          %p341 = pneg %p115
        $region42: #{mha_forward.1} parent=31 // pred_check_branch
          %343 = sbr.rel (%p341) target = $region44
        $region43: #{mha_forward.1} parent=31 // pred_region
          %s344 = sand.u32 %s29, 1
          %s345 = scalar_lea.sflag [#allocation11], %s344
          %s346 = sand.u32 %s105, 1
          %s347 = smul.addr %s346, 8
          %s348 = scalar_lea.vmem [#allocation12], %s347
          %s350 = ssub.s32 128, 128
          %351 = vsyncadd %s345, %s350
          %s352 = smul.addr %s36, 128
          %s353 = scalar_lea.hbm %s3, %s352
          %s355 = sshll.u32 %s348, 4
          %s356 = int_to_ptr.vmem [resolvable:$true] %s355
          %358 = dma.hbm_to_vmem [thread:$0]  %s353, 128, %s356, %s345
        $region44: #{mha_forward.1} parent=31 // pred_fallthru
          _
      $region32: #{mha_forward.1} parent=5 // pred_fallthru
        _
      %p359 = scmp.le.s32.totalorder 1, %s29
      %p360 = scmp.lt.s32.totalorder %s29, 3
      %p361 = pnand %p359, %p360
      %p362 = pneg %p361
      // Predicated region
      $region45: #{mha_forward.1} parent=5 // pred_check
        _
      $region46: #{mha_forward.1} parent=5 // pred_check_branch
        %364 = sbr.rel (%p361) target = $region48
      $region47: #{mha_forward.1} parent=5 // pred_region
        %s365 = ssub.s32 %s29, 1
        %s366 = sand.u32 %s56, 1
        %s367 = scalar_lea.sflag [#allocation8], %s366
        %s368 = sand.u32 %s56, 1
        %s369 = smul.addr %s368, 8
        %s370 = scalar_lea.vmem [#allocation7], %s369
        // Predicated region
        $region49: #{mha_forward.1} parent=47 // pred_check
          %p371 = pneg %p69
        $region50: #{mha_forward.1} parent=47 // pred_check_branch
          %373 = sbr.rel (%p371) target = $region52
        $region51: #{mha_forward.1} parent=47 // pred_region
          %374 = dma.done %s367, 128
        $region52: #{mha_forward.1} parent=47 // pred_fallthru
          _
        %s375 = sand.u32 %s34, 1
        %s376 = scalar_lea.sflag [#allocation11], %s375
        %s377 = sand.u32 %s82, 1
        %s378 = smul.addr %s377, 8
        %s379 = scalar_lea.vmem [#allocation10], %s378
        // Predicated region
        $region53: #{mha_forward.1} parent=47 // pred_check
          %p380 = pneg %p95
        $region54: #{mha_forward.1} parent=47 // pred_check_branch
          %382 = sbr.rel (%p380) target = $region56
        $region55: #{mha_forward.1} parent=47 // pred_region
          %383 = dma.done %s376, 128
        $region56: #{mha_forward.1} parent=47 // pred_fallthru
          _
        %s384 = sand.u32 %s34, 1
        %s385 = scalar_lea.sflag [#allocation11], %s384
        %s386 = sand.u32 %s108, 1
        %s387 = smul.addr %s386, 8
        %s388 = scalar_lea.vmem [#allocation12], %s387
        // Predicated region
        $region57: #{mha_forward.1} parent=47 // pred_check
          %p389 = pneg %p121
        $region58: #{mha_forward.1} parent=47 // pred_check_branch
          %391 = sbr.rel (%p389) target = $region60
        $region59: #{mha_forward.1} parent=47 // pred_region
          %392 = dma.done %s385, 128
        $region60: #{mha_forward.1} parent=47 // pred_fallthru
          _
        // Predicated region
        $region61: #{mha_forward.1} parent=47 // pred_check
          %p393 = pneg %p142
        $region62: #{mha_forward.1} parent=47 // pred_check_branch
          %395 = sbr.rel (%p393) target = $region64
        $region63: #{mha_forward.1} parent=47 // pred_region
          %396 = dma.done [#allocation14], 512
        $region64: #{mha_forward.1} parent=47 // pred_fallthru
          _
        // Predicated region
        $region65: #{mha_forward.1} parent=47 // pred_check
          %p397 = pneg %p163
        $region66: #{mha_forward.1} parent=47 // pred_check_branch
          %399 = sbr.rel (%p397) target = $region68
        $region67: #{mha_forward.1} parent=47 // pred_region
          %400 = dma.done [#allocation14], 512
        $region68: #{mha_forward.1} parent=47 // pred_fallthru
          _
        // Predicated region
        $region69: #{mha_forward.1} parent=47 // pred_check
          %p401 = pneg %p184
        $region70: #{mha_forward.1} parent=47 // pred_check_branch
          %403 = sbr.rel (%p401) target = $region72
        $region71: #{mha_forward.1} parent=47 // pred_region
          %404 = dma.done [#allocation17], 512
        $region72: #{mha_forward.1} parent=47 // pred_fallthru
          _
        // Predicated region
        $region73: #{mha_forward.1} parent=47 // pred_check
          %p405 = pneg %p205
        $region74: #{mha_forward.1} parent=47 // pred_check_branch
          %407 = sbr.rel (%p405) target = $region76
        $region75: #{mha_forward.1} parent=47 // pred_region
          %408 = dma.done [#allocation17], 512
        $region76: #{mha_forward.1} parent=47 // pred_fallthru
          _
        %s409 = sand.u32 %s56, 1
        %s410 = scalar_lea.sflag [#allocation8], %s409
        %s411 = sand.u32 %s56, 1
        %s412 = smul.addr %s411, 8
        %s413 = scalar_lea.vmem [#allocation7], %s412
        %p414 = pneg %p69
        %p415 = pneg %p66
        %s416 = sand.u32 %s34, 1
        %s417 = scalar_lea.sflag [#allocation11], %s416
        %s418 = sand.u32 %s82, 1
        %s419 = smul.addr %s418, 8
        %s420 = scalar_lea.vmem [#allocation10], %s419
        %p421 = pneg %p95
        %p422 = pneg %p92
        %s423 = sand.u32 %s34, 1
        %s424 = scalar_lea.sflag [#allocation11], %s423
        %s425 = sand.u32 %s108, 1
        %s426 = smul.addr %s425, 8
        %s427 = scalar_lea.vmem [#allocation12], %s426
        %p428 = pneg %p121
        %p429 = pneg %p118
        %p430 = pneg %p142
        %p431 = pneg %p139
        %p432 = pneg %p163
        %p433 = pneg %p160
        %p434 = pneg %p184
        %p435 = pneg %p181
        %p436 = pneg %p205
        %p437 = pneg %p202
        %p438 = pneg %p233
        %p439 = pneg %p230
        %s440 = sand.u32 %s220, 1
        %s441 = scalar_lea.sflag [#allocation9], %s440
        %s442 = sand.u32 %s220, 1
        %s443 = smul.addr %s442, 8
        %s444 = scalar_lea.vmem [#allocation19], %s443
        %p445 = scmp.eq.s32.totalorder %s39, 0
        // Predicated region
        $region77: #{mha_forward.1} parent=47 // pred_check
          %p446 = pneg %p445
        $region78: #{mha_forward.1} parent=47 // pred_check_branch
          %448 = sbr.rel (%p446) target = $region80
        $region79: #{mha_forward.1} parent=47 // pred_region
          %v449 = vld [vmem:[%s379] sm:$0xff]
          %v450 = vld [vmem:[#allocation15] sm:$0xff]
          %v451 = vld [vmem:[#allocation15 + $0x8] sm:$0xff]
          %v452 = vld [vmem:[#allocation15 + $0x10] sm:$0xff]
          %v453 = vld [vmem:[#allocation15 + $0x18] sm:$0xff]
          %vm454 = vcmask 261120
          %v456 = vsel %vm454, %v449, 0
          %458 = vmatprep.subr.mxu0 0.0
          %459 = vmatpush1.msra.mxu0 %v450
          %460 = vmatprep.subr.mxu0 0.0
          %461 = vmatpush1.msra.mxu0 %v451
          %462 = vmatprep.subr.mxu0 0.0
          %463 = vmatpush1.msra.mxu0 %v452
          %464 = vmatprep.subr.mxu0 0.0
          %465 = vmatpush1.msra.mxu0 %v453
          %466 = vmatprep.subr.mxu0 0.0
          %467 = vmatpush1.msra.mxu0 0.0
          %468 = vmatprep.subr.mxu0 0.0
          %469 = vmatpush1.msra.mxu0 0.0
          %470 = vmatprep.subr.mxu0 0.0
          %471 = vmatpush1.msra.mxu0 0.0
          %472 = vmatprep.subr.mxu0 0.0
          %473 = vmatpush1.msra.mxu0 0.0
          %474 = vmatprep.subr.mxu0 0.0
          %475 = vmatpush1.msra.mxu0 0.0
          %476 = vmatprep.subr.mxu0 0.0
          %477 = vmatpush1.msra.mxu0 0.0
          %478 = vmatprep.subr.mxu0 0.0
          %479 = vmatpush1.msra.mxu0 0.0
          %480 = vmatprep.subr.mxu0 0.0
          %481 = vmatpush1.msra.mxu0 0.0
          %482 = vmatprep.subr.mxu0 0.0
          %483 = vmatpush1.msra.mxu0 0.0
          %484 = vmatprep.subr.mxu0 0.0
          %485 = vmatpush1.msra.mxu0 0.0
          %486 = vmatprep.subr.mxu0 0.0
          %487 = vmatpush1.msra.mxu0 0.0
          %488 = vmatprep.subr.mxu0 0.0
          %489 = vmatpush1.msra.mxu0 0.0
          %490 = vmatprep.subr.mxu0 0.0
          %491 = vmatpush1.msra.mxu0 0.0
          %492 = vmatprep.subr.mxu0 0.0
          %493 = vmatpush1.msra.mxu0 0.0
          %494 = vmatprep.subr.mxu0 0.0
          %495 = vmatpush1.msra.mxu0 0.0
          %496 = vmatprep.subr.mxu0 0.0
          %497 = vmatpush1.msra.mxu0 0.0
          %498 = vmatprep.subr.mxu0 0.0
          %499 = vmatpush1.msra.mxu0 0.0
          %500 = vmatprep.subr.mxu0 0.0
          %501 = vmatpush1.msra.mxu0 0.0
          %502 = vmatprep.subr.mxu0 0.0
          %503 = vmatpush1.msra.mxu0 0.0
          %504 = vmatprep.subr.mxu0 0.0
          %505 = vmatpush1.msra.mxu0 0.0
          %506 = vmatprep.subr.mxu0 0.0
          %507 = vmatpush1.msra.mxu0 0.0
          %508 = vmatprep.subr.mxu0 0.0
          %509 = vmatpush1.msra.mxu0 0.0
          %510 = vmatprep.subr.mxu0 0.0
          %511 = vmatpush1.msra.mxu0 0.0
          %512 = vmatprep.subr.mxu0 0.0
          %513 = vmatpush1.msra.mxu0 0.0
          %514 = vmatprep.subr.mxu0 0.0
          %515 = vmatpush1.msra.mxu0 0.0
          %516 = vmatprep.subr.mxu0 0.0
          %517 = vmatpush1.msra.mxu0 0.0
          %518 = vmatprep.subr.mxu0 0.0
          %519 = vmatpush1.msra.mxu0 0.0
          %520 = vmatprep.subr.mxu0 0.0
          %521 = vmatpush1.msra.mxu0 0.0
          %522 = vmatprep.mubr.f32.mxu0 0.0
          %523 = vmatmul.mubr.f32.gmra.mrb[0].mxu0 %v456
          %v524 = vpop.f32.mrb[0].mxu0
          %v525 = vadd.f32 0.0, %v524
          %v526 = vpop.f32.mrb[0].mxu0
          %527 = vdwg.mxu0
          %v528 = vld [vmem:[%s388] sm:$0xff]
          %v529 = vld [vmem:[#allocation16] sm:$0xff]
          %v530 = vld [vmem:[#allocation16 + $0x8] sm:$0xff]
          %v531 = vld [vmem:[#allocation16 + $0x10] sm:$0xff]
          %v532 = vld [vmem:[#allocation16 + $0x18] sm:$0xff]
          %v534 = vsel %vm454, %v528, 0
          %536 = vmatprep.subr.mxu0 0.0
          %537 = vmatpush1.msra.mxu0 %v529
          %538 = vmatprep.subr.mxu0 0.0
          %539 = vmatpush1.msra.mxu0 %v530
          %540 = vmatprep.subr.mxu0 0.0
          %541 = vmatpush1.msra.mxu0 %v531
          %542 = vmatprep.subr.mxu0 0.0
          %543 = vmatpush1.msra.mxu0 %v532
          %544 = vmatprep.subr.mxu0 0.0
          %545 = vmatpush1.msra.mxu0 0.0
          %546 = vmatprep.subr.mxu0 0.0
          %547 = vmatpush1.msra.mxu0 0.0
          %548 = vmatprep.subr.mxu0 0.0
          %549 = vmatpush1.msra.mxu0 0.0
          %550 = vmatprep.subr.mxu0 0.0
          %551 = vmatpush1.msra.mxu0 0.0
          %552 = vmatprep.subr.mxu0 0.0
          %553 = vmatpush1.msra.mxu0 0.0
          %554 = vmatprep.subr.mxu0 0.0
          %555 = vmatpush1.msra.mxu0 0.0
          %556 = vmatprep.subr.mxu0 0.0
          %557 = vmatpush1.msra.mxu0 0.0
          %558 = vmatprep.subr.mxu0 0.0
          %559 = vmatpush1.msra.mxu0 0.0
          %560 = vmatprep.subr.mxu0 0.0
          %561 = vmatpush1.msra.mxu0 0.0
          %562 = vmatprep.subr.mxu0 0.0
          %563 = vmatpush1.msra.mxu0 0.0
          %564 = vmatprep.subr.mxu0 0.0
          %565 = vmatpush1.msra.mxu0 0.0
          %566 = vmatprep.subr.mxu0 0.0
          %567 = vmatpush1.msra.mxu0 0.0
          %568 = vmatprep.subr.mxu0 0.0
          %569 = vmatpush1.msra.mxu0 0.0
          %570 = vmatprep.subr.mxu0 0.0
          %571 = vmatpush1.msra.mxu0 0.0
          %572 = vmatprep.subr.mxu0 0.0
          %573 = vmatpush1.msra.mxu0 0.0
          %574 = vmatprep.subr.mxu0 0.0
          %575 = vmatpush1.msra.mxu0 0.0
          %576 = vmatprep.subr.mxu0 0.0
          %577 = vmatpush1.msra.mxu0 0.0
          %578 = vmatprep.subr.mxu0 0.0
          %579 = vmatpush1.msra.mxu0 0.0
          %580 = vmatprep.subr.mxu0 0.0
          %581 = vmatpush1.msra.mxu0 0.0
          %582 = vmatprep.subr.mxu0 0.0
          %583 = vmatpush1.msra.mxu0 0.0
          %584 = vmatprep.subr.mxu0 0.0
          %585 = vmatpush1.msra.mxu0 0.0
          %586 = vmatprep.subr.mxu0 0.0
          %587 = vmatpush1.msra.mxu0 0.0
          %588 = vmatprep.subr.mxu0 0.0
          %589 = vmatpush1.msra.mxu0 0.0
          %590 = vmatprep.subr.mxu0 0.0
          %591 = vmatpush1.msra.mxu0 0.0
          %592 = vmatprep.subr.mxu0 0.0
          %593 = vmatpush1.msra.mxu0 0.0
          %594 = vmatprep.subr.mxu0 0.0
          %595 = vmatpush1.msra.mxu0 0.0
          %596 = vmatprep.subr.mxu0 0.0
          %597 = vmatpush1.msra.mxu0 0.0
          %598 = vmatprep.subr.mxu0 0.0
          %599 = vmatpush1.msra.mxu0 0.0
          %600 = vmatprep.mubr.f32.mxu0 0.0
          %601 = vmatmul.mubr.f32.gmra.mrb[0].mxu0 %v534
          %v602 = vpop.f32.mrb[0].mxu0
          %v603 = vadd.f32 0.0, %v602
          %v604 = vpop.f32.mrb[0].mxu0
          %605 = vdwg.mxu0
          %606 = vxpose.xlu0.b32.start [1/16] %v525, 128
          %607 = vxpose.xlu0.b32.cont [2/16] 0.0, 128
          %608 = vxpose.xlu0.b32.cont [3/16] 0.0, 128
          %609 = vxpose.xlu0.b32.cont [4/16] 0.0, 128
          %610 = vxpose.xlu0.b32.cont [5/16] 0.0, 128
          %611 = vxpose.xlu0.b32.cont [6/16] 0.0, 128
          %612 = vxpose.xlu0.b32.cont [7/16] 0.0, 128
          %613 = vxpose.xlu0.b32.cont [8/16] 0.0, 128
          %614 = vxpose.xlu0.b32.cont [9/16] 0.0, 128
          %615 = vxpose.xlu0.b32.cont [10/16] 0.0, 128
          %616 = vxpose.xlu0.b32.cont [11/16] 0.0, 128
          %617 = vxpose.xlu0.b32.cont [12/16] 0.0, 128
          %618 = vxpose.xlu0.b32.cont [13/16] 0.0, 128
          %619 = vxpose.xlu0.b32.cont [14/16] 0.0, 128
          %620 = vxpose.xlu0.b32.cont [15/16] 0.0, 128
          %621 = vxpose.xlu0.b32.end [16/16] 0.0, 128
          %v622 = vpop.trf.xlu0
          %v623 = vpop.trf.xlu0
          %v624 = vpop.trf.xlu0
          %v625 = vpop.trf.xlu0
          %v626 = vpop.trf.xlu0
          %v627 = vpop.trf.xlu0
          %v628 = vpop.trf.xlu0
          %v629 = vpop.trf.xlu0
          %v630 = vpop.trf.xlu0
          %v631 = vpop.trf.xlu0
          %v632 = vpop.trf.xlu0
          %v633 = vpop.trf.xlu0
          %v634 = vpop.trf.xlu0
          %v635 = vpop.trf.xlu0
          %v636 = vpop.trf.xlu0
          %v637 = vpop.trf.xlu0
          %vm638 = vcmask 64512
          %639 = vst.msk [vmem:[#allocation2] sm:$0xff] %vm638, %v622
          %640 = vst.msk [vmem:[#allocation2 + $0x8] sm:$0xff] %vm638, %v623
          %641 = vst.msk [vmem:[#allocation2 + $0x10] sm:$0xff] %vm638, %v624
          %642 = vst.msk [vmem:[#allocation2 + $0x18] sm:$0xff] %vm638, %v625
          %643 = vst.msk [vmem:[#allocation3] sm:$0xff] %vm454, %v603
        $region80: #{mha_forward.1} parent=47 // pred_fallthru
          _
        %s644 = sld [smem:[#allocation6 + %s38]]
        %v645 = vld [vmem:[%s370] sm:$0xff]
        %v646 = vld [vmem:[#allocation13] sm:$0xff]
        %v647 = vld [vmem:[#allocation13 + $0x8] sm:$0xff]
        %v648 = vld [vmem:[#allocation13 + $0x10] sm:$0xff]
        %v649 = vld [vmem:[#allocation13 + $0x18] sm:$0xff]
        %vm650 = vcmask 261120
        %v652 = vsel %vm650, %v645, 0
        %654 = vmatprep.subr.mxu0 0.0
        %655 = vmatpush1.msra.mxu0 %v646
        %656 = vmatprep.subr.mxu0 0.0
        %657 = vmatpush1.msra.mxu0 %v647
        %658 = vmatprep.subr.mxu0 0.0
        %659 = vmatpush1.msra.mxu0 %v648
        %660 = vmatprep.subr.mxu0 0.0
        %661 = vmatpush1.msra.mxu0 %v649
        %662 = vmatprep.subr.mxu0 0.0
        %663 = vmatpush1.msra.mxu0 0.0
        %664 = vmatprep.subr.mxu0 0.0
        %665 = vmatpush1.msra.mxu0 0.0
        %666 = vmatprep.subr.mxu0 0.0
        %667 = vmatpush1.msra.mxu0 0.0
        %668 = vmatprep.subr.mxu0 0.0
        %669 = vmatpush1.msra.mxu0 0.0
        %670 = vmatprep.subr.mxu0 0.0
        %671 = vmatpush1.msra.mxu0 0.0
        %672 = vmatprep.subr.mxu0 0.0
        %673 = vmatpush1.msra.mxu0 0.0
        %674 = vmatprep.subr.mxu0 0.0
        %675 = vmatpush1.msra.mxu0 0.0
        %676 = vmatprep.subr.mxu0 0.0
        %677 = vmatpush1.msra.mxu0 0.0
        %678 = vmatprep.subr.mxu0 0.0
        %679 = vmatpush1.msra.mxu0 0.0
        %680 = vmatprep.subr.mxu0 0.0
        %681 = vmatpush1.msra.mxu0 0.0
        %682 = vmatprep.subr.mxu0 0.0
        %683 = vmatpush1.msra.mxu0 0.0
        %684 = vmatprep.subr.mxu0 0.0
        %685 = vmatpush1.msra.mxu0 0.0
        %686 = vmatprep.subr.mxu0 0.0
        %687 = vmatpush1.msra.mxu0 0.0
        %688 = vmatprep.subr.mxu0 0.0
        %689 = vmatpush1.msra.mxu0 0.0
        %690 = vmatprep.subr.mxu0 0.0
        %691 = vmatpush1.msra.mxu0 0.0
        %692 = vmatprep.subr.mxu0 0.0
        %693 = vmatpush1.msra.mxu0 0.0
        %694 = vmatprep.subr.mxu0 0.0
        %695 = vmatpush1.msra.mxu0 0.0
        %696 = vmatprep.subr.mxu0 0.0
        %697 = vmatpush1.msra.mxu0 0.0
        %698 = vmatprep.subr.mxu0 0.0
        %699 = vmatpush1.msra.mxu0 0.0
        %700 = vmatprep.subr.mxu0 0.0
        %701 = vmatpush1.msra.mxu0 0.0
        %702 = vmatprep.subr.mxu0 0.0
        %703 = vmatpush1.msra.mxu0 0.0
        %704 = vmatprep.subr.mxu0 0.0
        %705 = vmatpush1.msra.mxu0 0.0
        %706 = vmatprep.subr.mxu0 0.0
        %707 = vmatpush1.msra.mxu0 0.0
        %708 = vmatprep.subr.mxu0 0.0
        %709 = vmatpush1.msra.mxu0 0.0
        %710 = vmatprep.subr.mxu0 0.0
        %711 = vmatpush1.msra.mxu0 0.0
        %712 = vmatprep.subr.mxu0 0.0
        %713 = vmatpush1.msra.mxu0 0.0
        %714 = vmatprep.subr.mxu0 0.0
        %715 = vmatpush1.msra.mxu0 0.0
        %716 = vmatprep.subr.mxu0 0.0
        %717 = vmatpush1.msra.mxu0 0.0
        %718 = vmatprep.mubr.f32.mxu0 0.0
        %719 = vmatmul.mubr.f32.gmra.mrb[0].mxu0 %v652
        %v720 = vpop.f32.mrb[0].mxu0
        %v721 = vadd.f32 0.0, %v720
        %v722 = vpop.f32.mrb[0].mxu0
        %723 = vdwg.mxu0
        %v724 = vmul.f32 %v721, 0.35355338
        %v725 = vlaneseq
        %v726 = vand.u32 %v725, 127
        %v727 = vstv %s644
        %vm728 = vcmp.lt.s32.totalorder %v726, %v727
        %v729 = vld [vmem:[#allocation2] sm:$0xff]
        %vm730 = vcmask 64512
        %v732 = vsel %vm730, %v724, 0
        %734 = vmatprep.subr.mxu0 0.0
        %735 = vmatpush1.msra.mxu0 %v729
        %736 = vmatprep.subr.mxu0 0.0
        %737 = vmatpush1.msra.mxu0 0.0
        %738 = vmatprep.subr.mxu0 0.0
        %739 = vmatpush1.msra.mxu0 0.0
        %740 = vmatprep.subr.mxu0 0.0
        %741 = vmatpush1.msra.mxu0 0.0
        %742 = vmatprep.subr.mxu0 0.0
        %743 = vmatpush1.msra.mxu0 0.0
        %744 = vmatprep.subr.mxu0 0.0
        %745 = vmatpush1.msra.mxu0 0.0
        %746 = vmatprep.subr.mxu0 0.0
        %747 = vmatpush1.msra.mxu0 0.0
        %748 = vmatprep.subr.mxu0 0.0
        %749 = vmatpush1.msra.mxu0 0.0
        %750 = vmatprep.subr.mxu0 0.0
        %751 = vmatpush1.msra.mxu0 0.0
        %752 = vmatprep.subr.mxu0 0.0
        %753 = vmatpush1.msra.mxu0 0.0
        %754 = vmatprep.subr.mxu0 0.0
        %755 = vmatpush1.msra.mxu0 0.0
        %756 = vmatprep.subr.mxu0 0.0
        %757 = vmatpush1.msra.mxu0 0.0
        %758 = vmatprep.subr.mxu0 0.0
        %759 = vmatpush1.msra.mxu0 0.0
        %760 = vmatprep.subr.mxu0 0.0
        %761 = vmatpush1.msra.mxu0 0.0
        %762 = vmatprep.subr.mxu0 0.0
        %763 = vmatpush1.msra.mxu0 0.0
        %764 = vmatprep.subr.mxu0 0.0
        %765 = vmatpush1.msra.mxu0 0.0
        %766 = vmatprep.subr.mxu0 0.0
        %767 = vmatpush1.msra.mxu0 0.0
        %768 = vmatprep.subr.mxu0 0.0
        %769 = vmatpush1.msra.mxu0 0.0
        %770 = vmatprep.subr.mxu0 0.0
        %771 = vmatpush1.msra.mxu0 0.0
        %772 = vmatprep.subr.mxu0 0.0
        %773 = vmatpush1.msra.mxu0 0.0
        %774 = vmatprep.subr.mxu0 0.0
        %775 = vmatpush1.msra.mxu0 0.0
        %776 = vmatprep.subr.mxu0 0.0
        %777 = vmatpush1.msra.mxu0 0.0
        %778 = vmatprep.subr.mxu0 0.0
        %779 = vmatpush1.msra.mxu0 0.0
        %780 = vmatprep.subr.mxu0 0.0
        %781 = vmatpush1.msra.mxu0 0.0
        %782 = vmatprep.subr.mxu0 0.0
        %783 = vmatpush1.msra.mxu0 0.0
        %784 = vmatprep.subr.mxu0 0.0
        %785 = vmatpush1.msra.mxu0 0.0
        %786 = vmatprep.subr.mxu0 0.0
        %787 = vmatpush1.msra.mxu0 0.0
        %788 = vmatprep.subr.mxu0 0.0
        %789 = vmatpush1.msra.mxu0 0.0
        %790 = vmatprep.subr.mxu0 0.0
        %791 = vmatpush1.msra.mxu0 0.0
        %792 = vmatprep.subr.mxu0 0.0
        %793 = vmatpush1.msra.mxu0 0.0
        %794 = vmatprep.subr.mxu0 0.0
        %795 = vmatpush1.msra.mxu0 0.0
        %796 = vmatprep.subr.mxu0 0.0
        %797 = vmatpush1.msra.mxu0 0.0
        %798 = vmatprep.mubr.f32.mxu0 0.0
        %799 = vmatmul.mubr.f32.gmra.mrb[0].mxu0 %v732
        %v800 = vpop.f32.mrb[0].mxu0
        %v801 = vadd.f32 0.0, %v800
        %v802 = vpop.f32.mrb[0].mxu0
        %803 = vdwg.mxu0
        %v804 = vsel %vm728, %v801, -1000000.0
        %v805 = vsel %vm730, %v804, -inf
        %806 = vmax.xlane.f32.xlu0 %v805
        %v807 = vpop.xlane.xlu0 %806
        %v808 = vsub.f32 %v804, %v807
        %v809 = vmul.f32 %v808, 1.442695
        %v810 = vpow.pop %v809
        %v811 = vsel %vm730, %v810, 0.0
        %812 = vadd.xlane.f32.xlu0 %v811
        %v813 = vpop.xlane.xlu0 %812
        %v814 = vrcp.pop %v813
        %v815 = vmul.f32 %v810, %v814
        %v816 = vld [vmem:[#allocation3] sm:$0xff]
        %v818 = vsel %vm730, %v815, 0
        %820 = vmatprep.subr.mxu0 0.0
        %821 = vmatpush1.msra.mxu0 %v816
        %822 = vmatprep.subr.mxu0 0.0
        %823 = vmatpush1.msra.mxu0 0.0
        %824 = vmatprep.subr.mxu0 0.0
        %825 = vmatpush1.msra.mxu0 0.0
        %826 = vmatprep.subr.mxu0 0.0
        %827 = vmatpush1.msra.mxu0 0.0
        %828 = vmatprep.subr.mxu0 0.0
        %829 = vmatpush1.msra.mxu0 0.0
        %830 = vmatprep.subr.mxu0 0.0
        %831 = vmatpush1.msra.mxu0 0.0
        %832 = vmatprep.subr.mxu0 0.0
        %833 = vmatpush1.msra.mxu0 0.0
        %834 = vmatprep.subr.mxu0 0.0
        %835 = vmatpush1.msra.mxu0 0.0
        %836 = vmatprep.subr.mxu0 0.0
        %837 = vmatpush1.msra.mxu0 0.0
        %838 = vmatprep.subr.mxu0 0.0
        %839 = vmatpush1.msra.mxu0 0.0
        %840 = vmatprep.subr.mxu0 0.0
        %841 = vmatpush1.msra.mxu0 0.0
        %842 = vmatprep.subr.mxu0 0.0
        %843 = vmatpush1.msra.mxu0 0.0
        %844 = vmatprep.subr.mxu0 0.0
        %845 = vmatpush1.msra.mxu0 0.0
        %846 = vmatprep.subr.mxu0 0.0
        %847 = vmatpush1.msra.mxu0 0.0
        %848 = vmatprep.subr.mxu0 0.0
        %849 = vmatpush1.msra.mxu0 0.0
        %850 = vmatprep.subr.mxu0 0.0
        %851 = vmatpush1.msra.mxu0 0.0
        %852 = vmatprep.subr.mxu0 0.0
        %853 = vmatpush1.msra.mxu0 0.0
        %854 = vmatprep.subr.mxu0 0.0
        %855 = vmatpush1.msra.mxu0 0.0
        %856 = vmatprep.subr.mxu0 0.0
        %857 = vmatpush1.msra.mxu0 0.0
        %858 = vmatprep.subr.mxu0 0.0
        %859 = vmatpush1.msra.mxu0 0.0
        %860 = vmatprep.subr.mxu0 0.0
        %861 = vmatpush1.msra.mxu0 0.0
        %862 = vmatprep.subr.mxu0 0.0
        %863 = vmatpush1.msra.mxu0 0.0
        %864 = vmatprep.subr.mxu0 0.0
        %865 = vmatpush1.msra.mxu0 0.0
        %866 = vmatprep.subr.mxu0 0.0
        %867 = vmatpush1.msra.mxu0 0.0
        %868 = vmatprep.subr.mxu0 0.0
        %869 = vmatpush1.msra.mxu0 0.0
        %870 = vmatprep.subr.mxu0 0.0
        %871 = vmatpush1.msra.mxu0 0.0
        %872 = vmatprep.subr.mxu0 0.0
        %873 = vmatpush1.msra.mxu0 0.0
        %874 = vmatprep.subr.mxu0 0.0
        %875 = vmatpush1.msra.mxu0 0.0
        %876 = vmatprep.subr.mxu0 0.0
        %877 = vmatpush1.msra.mxu0 0.0
        %878 = vmatprep.subr.mxu0 0.0
        %879 = vmatpush1.msra.mxu0 0.0
        %880 = vmatprep.subr.mxu0 0.0
        %881 = vmatpush1.msra.mxu0 0.0
        %882 = vmatprep.subr.mxu0 0.0
        %883 = vmatpush1.msra.mxu0 0.0
        %884 = vmatprep.mubr.f32.mxu0 0.0
        %885 = vmatmul.mubr.f32.gmra.mrb[0].mxu0 %v818
        %v886 = vpop.f32.mrb[0].mxu0
        %v887 = vadd.f32 0.0, %v886
        %v888 = vpop.f32.mrb[0].mxu0
        %889 = vdwg.mxu0
        %890 = vst.msk [vmem:[#allocation4] sm:$0xff] %vm730, %v887
        %v891 = vld [vmem:[#allocation2 + $0x8] sm:$0xff]
        %892 = vrot.lane.b32.xlu0 %v724, 120
        %v893 = vpop.permute.xlu0 %892
        %v894 = vsel %vm730, %v893, 0
        %896 = vmatprep.subr.mxu0 0.0
        %897 = vmatpush1.msra.mxu0 %v891
        %898 = vmatprep.subr.mxu0 0.0
        %899 = vmatpush1.msra.mxu0 0.0
        %900 = vmatprep.subr.mxu0 0.0
        %901 = vmatpush1.msra.mxu0 0.0
        %902 = vmatprep.subr.mxu0 0.0
        %903 = vmatpush1.msra.mxu0 0.0
        %904 = vmatprep.subr.mxu0 0.0
        %905 = vmatpush1.msra.mxu0 0.0
        %906 = vmatprep.subr.mxu0 0.0
        %907 = vmatpush1.msra.mxu0 0.0
        %908 = vmatprep.subr.mxu0 0.0
        %909 = vmatpush1.msra.mxu0 0.0
        %910 = vmatprep.subr.mxu0 0.0
        %911 = vmatpush1.msra.mxu0 0.0
        %912 = vmatprep.subr.mxu0 0.0
        %913 = vmatpush1.msra.mxu0 0.0
        %914 = vmatprep.subr.mxu0 0.0
        %915 = vmatpush1.msra.mxu0 0.0
        %916 = vmatprep.subr.mxu0 0.0
        %917 = vmatpush1.msra.mxu0 0.0
        %918 = vmatprep.subr.mxu0 0.0
        %919 = vmatpush1.msra.mxu0 0.0
        %920 = vmatprep.subr.mxu0 0.0
        %921 = vmatpush1.msra.mxu0 0.0
        %922 = vmatprep.subr.mxu0 0.0
        %923 = vmatpush1.msra.mxu0 0.0
        %924 = vmatprep.subr.mxu0 0.0
        %925 = vmatpush1.msra.mxu0 0.0
        %926 = vmatprep.subr.mxu0 0.0
        %927 = vmatpush1.msra.mxu0 0.0
        %928 = vmatprep.subr.mxu0 0.0
        %929 = vmatpush1.msra.mxu0 0.0
        %930 = vmatprep.subr.mxu0 0.0
        %931 = vmatpush1.msra.mxu0 0.0
        %932 = vmatprep.subr.mxu0 0.0
        %933 = vmatpush1.msra.mxu0 0.0
        %934 = vmatprep.subr.mxu0 0.0
        %935 = vmatpush1.msra.mxu0 0.0
        %936 = vmatprep.subr.mxu0 0.0
        %937 = vmatpush1.msra.mxu0 0.0
        %938 = vmatprep.subr.mxu0 0.0
        %939 = vmatpush1.msra.mxu0 0.0
        %940 = vmatprep.subr.mxu0 0.0
        %941 = vmatpush1.msra.mxu0 0.0
        %942 = vmatprep.subr.mxu0 0.0
        %943 = vmatpush1.msra.mxu0 0.0
        %944 = vmatprep.subr.mxu0 0.0
        %945 = vmatpush1.msra.mxu0 0.0
        %946 = vmatprep.subr.mxu0 0.0
        %947 = vmatpush1.msra.mxu0 0.0
        %948 = vmatprep.subr.mxu0 0.0
        %949 = vmatpush1.msra.mxu0 0.0
        %950 = vmatprep.subr.mxu0 0.0
        %951 = vmatpush1.msra.mxu0 0.0
        %952 = vmatprep.subr.mxu0 0.0
        %953 = vmatpush1.msra.mxu0 0.0
        %954 = vmatprep.subr.mxu0 0.0
        %955 = vmatpush1.msra.mxu0 0.0
        %956 = vmatprep.subr.mxu0 0.0
        %957 = vmatpush1.msra.mxu0 0.0
        %958 = vmatprep.subr.mxu0 0.0
        %959 = vmatpush1.msra.mxu0 0.0
        %960 = vmatprep.mubr.f32.mxu0 0.0
        %961 = vmatmul.mubr.f32.gmra.mrb[0].mxu0 %v894
        %v962 = vpop.f32.mrb[0].mxu0
        %v963 = vadd.f32 0.0, %v962
        %v964 = vpop.f32.mrb[0].mxu0
        %965 = vdwg.mxu0
        %v966 = vsel %vm728, %v963, -1000000.0
        %v967 = vsel %vm730, %v966, -inf
        %968 = vmax.xlane.f32.xlu0 %v967
        %v969 = vpop.xlane.xlu0 %968
        %v970 = vsub.f32 %v966, %v969
        %v971 = vmul.f32 %v970, 1.442695
        %v972 = vpow.pop %v971
        %v973 = vsel %vm730, %v972, 0.0
        %974 = vadd.xlane.f32.xlu0 %v973
        %v975 = vpop.xlane.xlu0 %974
        %v976 = vrcp.pop %v975
        %v977 = vmul.f32 %v972, %v976
        %v978 = vld [vmem:[#allocation3] sm:$0xff]
        %980 = vrot.lane.b32.xlu0 %v978, 120
        %v981 = vpop.permute.xlu0 %980
        %v984 = vsel %vm730, %v977, 0
        %986 = vmatprep.subr.mxu0 0.0
        %987 = vmatpush1.msra.mxu0 %v981
        %988 = vmatprep.subr.mxu0 0.0
        %989 = vmatpush1.msra.mxu0 0.0
        %990 = vmatprep.subr.mxu0 0.0
        %991 = vmatpush1.msra.mxu0 0.0
        %992 = vmatprep.subr.mxu0 0.0
        %993 = vmatpush1.msra.mxu0 0.0
        %994 = vmatprep.subr.mxu0 0.0
        %995 = vmatpush1.msra.mxu0 0.0
        %996 = vmatprep.subr.mxu0 0.0
        %997 = vmatpush1.msra.mxu0 0.0
        %998 = vmatprep.subr.mxu0 0.0
        %999 = vmatpush1.msra.mxu0 0.0
        %1000 = vmatprep.subr.mxu0 0.0
        %1001 = vmatpush1.msra.mxu0 0.0
        %1002 = vmatprep.subr.mxu0 0.0
        %1003 = vmatpush1.msra.mxu0 0.0
        %1004 = vmatprep.subr.mxu0 0.0
        %1005 = vmatpush1.msra.mxu0 0.0
        %1006 = vmatprep.subr.mxu0 0.0
        %1007 = vmatpush1.msra.mxu0 0.0
        %1008 = vmatprep.subr.mxu0 0.0
        %1009 = vmatpush1.msra.mxu0 0.0
        %1010 = vmatprep.subr.mxu0 0.0
        %1011 = vmatpush1.msra.mxu0 0.0
        %1012 = vmatprep.subr.mxu0 0.0
        %1013 = vmatpush1.msra.mxu0 0.0
        %1014 = vmatprep.subr.mxu0 0.0
        %1015 = vmatpush1.msra.mxu0 0.0
        %1016 = vmatprep.subr.mxu0 0.0
        %1017 = vmatpush1.msra.mxu0 0.0
        %1018 = vmatprep.subr.mxu0 0.0
        %1019 = vmatpush1.msra.mxu0 0.0
        %1020 = vmatprep.subr.mxu0 0.0
        %1021 = vmatpush1.msra.mxu0 0.0
        %1022 = vmatprep.subr.mxu0 0.0
        %1023 = vmatpush1.msra.mxu0 0.0
        %1024 = vmatprep.subr.mxu0 0.0
        %1025 = vmatpush1.msra.mxu0 0.0
        %1026 = vmatprep.subr.mxu0 0.0
        %1027 = vmatpush1.msra.mxu0 0.0
        %1028 = vmatprep.subr.mxu0 0.0
        %1029 = vmatpush1.msra.mxu0 0.0
        %1030 = vmatprep.subr.mxu0 0.0
        %1031 = vmatpush1.msra.mxu0 0.0
        %1032 = vmatprep.subr.mxu0 0.0
        %1033 = vmatpush1.msra.mxu0 0.0
        %1034 = vmatprep.subr.mxu0 0.0
        %1035 = vmatpush1.msra.mxu0 0.0
        %1036 = vmatprep.subr.mxu0 0.0
        %1037 = vmatpush1.msra.mxu0 0.0
        %1038 = vmatprep.subr.mxu0 0.0
        %1039 = vmatpush1.msra.mxu0 0.0
        %1040 = vmatprep.subr.mxu0 0.0
        %1041 = vmatpush1.msra.mxu0 0.0
        %1042 = vmatprep.subr.mxu0 0.0
        %1043 = vmatpush1.msra.mxu0 0.0
        %1044 = vmatprep.subr.mxu0 0.0
        %1045 = vmatpush1.msra.mxu0 0.0
        %1046 = vmatprep.subr.mxu0 0.0
        %1047 = vmatpush1.msra.mxu0 0.0
        %1048 = vmatprep.subr.mxu0 0.0
        %1049 = vmatpush1.msra.mxu0 0.0
        %1050 = vmatprep.mubr.f32.mxu0 0.0
        %1051 = vmatmul.mubr.f32.gmra.mrb[0].mxu0 %v984
        %v1052 = vpop.f32.mrb[0].mxu0
        %v1053 = vadd.f32 0.0, %v1052
        %v1054 = vpop.f32.mrb[0].mxu0
        %1055 = vdwg.mxu0
        %1057 = vrot.lane.b32.xlu0 %v1053, 8
        %v1058 = vpop.permute.xlu0 %1057
        %vm1060 = vcmask 130112
        %1061 = vst.msk [vmem:[#allocation4] sm:$0xff] %vm1060, %v1058
        %v1062 = vld [vmem:[#allocation2 + $0x10] sm:$0xff]
        %1063 = vrot.lane.b32.xlu0 %v724, 112
        %v1064 = vpop.permute.xlu0 %1063
        %v1065 = vsel %vm730, %v1064, 0
        %1067 = vmatprep.subr.mxu0 0.0
        %1068 = vmatpush1.msra.mxu0 %v1062
        %1069 = vmatprep.subr.mxu0 0.0
        %1070 = vmatpush1.msra.mxu0 0.0
        %1071 = vmatprep.subr.mxu0 0.0
        %1072 = vmatpush1.msra.mxu0 0.0
        %1073 = vmatprep.subr.mxu0 0.0
        %1074 = vmatpush1.msra.mxu0 0.0
        %1075 = vmatprep.subr.mxu0 0.0
        %1076 = vmatpush1.msra.mxu0 0.0
        %1077 = vmatprep.subr.mxu0 0.0
        %1078 = vmatpush1.msra.mxu0 0.0
        %1079 = vmatprep.subr.mxu0 0.0
        %1080 = vmatpush1.msra.mxu0 0.0
        %1081 = vmatprep.subr.mxu0 0.0
        %1082 = vmatpush1.msra.mxu0 0.0
        %1083 = vmatprep.subr.mxu0 0.0
        %1084 = vmatpush1.msra.mxu0 0.0
        %1085 = vmatprep.subr.mxu0 0.0
        %1086 = vmatpush1.msra.mxu0 0.0
        %1087 = vmatprep.subr.mxu0 0.0
        %1088 = vmatpush1.msra.mxu0 0.0
        %1089 = vmatprep.subr.mxu0 0.0
        %1090 = vmatpush1.msra.mxu0 0.0
        %1091 = vmatprep.subr.mxu0 0.0
        %1092 = vmatpush1.msra.mxu0 0.0
        %1093 = vmatprep.subr.mxu0 0.0
        %1094 = vmatpush1.msra.mxu0 0.0
        %1095 = vmatprep.subr.mxu0 0.0
        %1096 = vmatpush1.msra.mxu0 0.0
        %1097 = vmatprep.subr.mxu0 0.0
        %1098 = vmatpush1.msra.mxu0 0.0
        %1099 = vmatprep.subr.mxu0 0.0
        %1100 = vmatpush1.msra.mxu0 0.0
        %1101 = vmatprep.subr.mxu0 0.0
        %1102 = vmatpush1.msra.mxu0 0.0
        %1103 = vmatprep.subr.mxu0 0.0
        %1104 = vmatpush1.msra.mxu0 0.0
        %1105 = vmatprep.subr.mxu0 0.0
        %1106 = vmatpush1.msra.mxu0 0.0
        %1107 = vmatprep.subr.mxu0 0.0
        %1108 = vmatpush1.msra.mxu0 0.0
        %1109 = vmatprep.subr.mxu0 0.0
        %1110 = vmatpush1.msra.mxu0 0.0
        %1111 = vmatprep.subr.mxu0 0.0
        %1112 = vmatpush1.msra.mxu0 0.0
        %1113 = vmatprep.subr.mxu0 0.0
        %1114 = vmatpush1.msra.mxu0 0.0
        %1115 = vmatprep.subr.mxu0 0.0
        %1116 = vmatpush1.msra.mxu0 0.0
        %1117 = vmatprep.subr.mxu0 0.0
        %1118 = vmatpush1.msra.mxu0 0.0
        %1119 = vmatprep.subr.mxu0 0.0
        %1120 = vmatpush1.msra.mxu0 0.0
        %1121 = vmatprep.subr.mxu0 0.0
        %1122 = vmatpush1.msra.mxu0 0.0
        %1123 = vmatprep.subr.mxu0 0.0
        %1124 = vmatpush1.msra.mxu0 0.0
        %1125 = vmatprep.subr.mxu0 0.0
        %1126 = vmatpush1.msra.mxu0 0.0
        %1127 = vmatprep.subr.mxu0 0.0
        %1128 = vmatpush1.msra.mxu0 0.0
        %1129 = vmatprep.subr.mxu0 0.0
        %1130 = vmatpush1.msra.mxu0 0.0
        %1131 = vmatprep.mubr.f32.mxu0 0.0
        %1132 = vmatmul.mubr.f32.gmra.mrb[0].mxu0 %v1065
        %v1133 = vpop.f32.mrb[0].mxu0
        %v1134 = vadd.f32 0.0, %v1133
        %v1135 = vpop.f32.mrb[0].mxu0
        %1136 = vdwg.mxu0
        %v1137 = vsel %vm728, %v1134, -1000000.0
        %v1138 = vsel %vm730, %v1137, -inf
        %1139 = vmax.xlane.f32.xlu0 %v1138
        %v1140 = vpop.xlane.xlu0 %1139
        %v1141 = vsub.f32 %v1137, %v1140
        %v1142 = vmul.f32 %v1141, 1.442695
        %v1143 = vpow.pop %v1142
        %v1144 = vsel %vm730, %v1143, 0.0
        %1145 = vadd.xlane.f32.xlu0 %v1144
        %v1146 = vpop.xlane.xlu0 %1145
        %v1147 = vrcp.pop %v1146
        %v1148 = vmul.f32 %v1143, %v1147
        %v1149 = vld [vmem:[#allocation3] sm:$0xff]
        %1151 = vrot.lane.b32.xlu0 %v1149, 112
        %v1152 = vpop.permute.xlu0 %1151
        %v1155 = vsel %vm730, %v1148, 0
        %1157 = vmatprep.subr.mxu0 0.0
        %1158 = vmatpush1.msra.mxu0 %v1152
        %1159 = vmatprep.subr.mxu0 0.0
        %1160 = vmatpush1.msra.mxu0 0.0
        %1161 = vmatprep.subr.mxu0 0.0
        %1162 = vmatpush1.msra.mxu0 0.0
        %1163 = vmatprep.subr.mxu0 0.0
        %1164 = vmatpush1.msra.mxu0 0.0
        %1165 = vmatprep.subr.mxu0 0.0
        %1166 = vmatpush1.msra.mxu0 0.0
        %1167 = vmatprep.subr.mxu0 0.0
        %1168 = vmatpush1.msra.mxu0 0.0
        %1169 = vmatprep.subr.mxu0 0.0
        %1170 = vmatpush1.msra.mxu0 0.0
        %1171 = vmatprep.subr.mxu0 0.0
        %1172 = vmatpush1.msra.mxu0 0.0
        %1173 = vmatprep.subr.mxu0 0.0
        %1174 = vmatpush1.msra.mxu0 0.0
        %1175 = vmatprep.subr.mxu0 0.0
        %1176 = vmatpush1.msra.mxu0 0.0
        %1177 = vmatprep.subr.mxu0 0.0
        %1178 = vmatpush1.msra.mxu0 0.0
        %1179 = vmatprep.subr.mxu0 0.0
        %1180 = vmatpush1.msra.mxu0 0.0
        %1181 = vmatprep.subr.mxu0 0.0
        %1182 = vmatpush1.msra.mxu0 0.0
        %1183 = vmatprep.subr.mxu0 0.0
        %1184 = vmatpush1.msra.mxu0 0.0
        %1185 = vmatprep.subr.mxu0 0.0
        %1186 = vmatpush1.msra.mxu0 0.0
        %1187 = vmatprep.subr.mxu0 0.0
        %1188 = vmatpush1.msra.mxu0 0.0
        %1189 = vmatprep.subr.mxu0 0.0
        %1190 = vmatpush1.msra.mxu0 0.0
        %1191 = vmatprep.subr.mxu0 0.0
        %1192 = vmatpush1.msra.mxu0 0.0
        %1193 = vmatprep.subr.mxu0 0.0
        %1194 = vmatpush1.msra.mxu0 0.0
        %1195 = vmatprep.subr.mxu0 0.0
        %1196 = vmatpush1.msra.mxu0 0.0
        %1197 = vmatprep.subr.mxu0 0.0
        %1198 = vmatpush1.msra.mxu0 0.0
        %1199 = vmatprep.subr.mxu0 0.0
        %1200 = vmatpush1.msra.mxu0 0.0
        %1201 = vmatprep.subr.mxu0 0.0
        %1202 = vmatpush1.msra.mxu0 0.0
        %1203 = vmatprep.subr.mxu0 0.0
        %1204 = vmatpush1.msra.mxu0 0.0
        %1205 = vmatprep.subr.mxu0 0.0
        %1206 = vmatpush1.msra.mxu0 0.0
        %1207 = vmatprep.subr.mxu0 0.0
        %1208 = vmatpush1.msra.mxu0 0.0
        %1209 = vmatprep.subr.mxu0 0.0
        %1210 = vmatpush1.msra.mxu0 0.0
        %1211 = vmatprep.subr.mxu0 0.0
        %1212 = vmatpush1.msra.mxu0 0.0
        %1213 = vmatprep.subr.mxu0 0.0
        %1214 = vmatpush1.msra.mxu0 0.0
        %1215 = vmatprep.subr.mxu0 0.0
        %1216 = vmatpush1.msra.mxu0 0.0
        %1217 = vmatprep.subr.mxu0 0.0
        %1218 = vmatpush1.msra.mxu0 0.0
        %1219 = vmatprep.subr.mxu0 0.0
        %1220 = vmatpush1.msra.mxu0 0.0
        %1221 = vmatprep.mubr.f32.mxu0 0.0
        %1222 = vmatmul.mubr.f32.gmra.mrb[0].mxu0 %v1155
        %v1223 = vpop.f32.mrb[0].mxu0
        %v1224 = vadd.f32 0.0, %v1223
        %v1225 = vpop.f32.mrb[0].mxu0
        %1226 = vdwg.mxu0
        %1228 = vrot.lane.b32.xlu0 %v1224, 16
        %v1229 = vpop.permute.xlu0 %1228
        %vm1231 = vcmask 195712
        %1232 = vst.msk [vmem:[#allocation4] sm:$0xff] %vm1231, %v1229
        %v1233 = vld [vmem:[#allocation2 + $0x18] sm:$0xff]
        %1234 = vrot.lane.b32.xlu0 %v724, 104
        %v1235 = vpop.permute.xlu0 %1234
        %v1236 = vsel %vm730, %v1235, 0
        %1238 = vmatprep.subr.mxu0 0.0
        %1239 = vmatpush1.msra.mxu0 %v1233
        %1240 = vmatprep.subr.mxu0 0.0
        %1241 = vmatpush1.msra.mxu0 0.0
        %1242 = vmatprep.subr.mxu0 0.0
        %1243 = vmatpush1.msra.mxu0 0.0
        %1244 = vmatprep.subr.mxu0 0.0
        %1245 = vmatpush1.msra.mxu0 0.0
        %1246 = vmatprep.subr.mxu0 0.0
        %1247 = vmatpush1.msra.mxu0 0.0
        %1248 = vmatprep.subr.mxu0 0.0
        %1249 = vmatpush1.msra.mxu0 0.0
        %1250 = vmatprep.subr.mxu0 0.0
        %1251 = vmatpush1.msra.mxu0 0.0
        %1252 = vmatprep.subr.mxu0 0.0
        %1253 = vmatpush1.msra.mxu0 0.0
        %1254 = vmatprep.subr.mxu0 0.0
        %1255 = vmatpush1.msra.mxu0 0.0
        %1256 = vmatprep.subr.mxu0 0.0
        %1257 = vmatpush1.msra.mxu0 0.0
        %1258 = vmatprep.subr.mxu0 0.0
        %1259 = vmatpush1.msra.mxu0 0.0
        %1260 = vmatprep.subr.mxu0 0.0
        %1261 = vmatpush1.msra.mxu0 0.0
        %1262 = vmatprep.subr.mxu0 0.0
        %1263 = vmatpush1.msra.mxu0 0.0
        %1264 = vmatprep.subr.mxu0 0.0
        %1265 = vmatpush1.msra.mxu0 0.0
        %1266 = vmatprep.subr.mxu0 0.0
        %1267 = vmatpush1.msra.mxu0 0.0
        %1268 = vmatprep.subr.mxu0 0.0
        %1269 = vmatpush1.msra.mxu0 0.0
        %1270 = vmatprep.subr.mxu0 0.0
        %1271 = vmatpush1.msra.mxu0 0.0
        %1272 = vmatprep.subr.mxu0 0.0
        %1273 = vmatpush1.msra.mxu0 0.0
        %1274 = vmatprep.subr.mxu0 0.0
        %1275 = vmatpush1.msra.mxu0 0.0
        %1276 = vmatprep.subr.mxu0 0.0
        %1277 = vmatpush1.msra.mxu0 0.0
        %1278 = vmatprep.subr.mxu0 0.0
        %1279 = vmatpush1.msra.mxu0 0.0
        %1280 = vmatprep.subr.mxu0 0.0
        %1281 = vmatpush1.msra.mxu0 0.0
        %1282 = vmatprep.subr.mxu0 0.0
        %1283 = vmatpush1.msra.mxu0 0.0
        %1284 = vmatprep.subr.mxu0 0.0
        %1285 = vmatpush1.msra.mxu0 0.0
        %1286 = vmatprep.subr.mxu0 0.0
        %1287 = vmatpush1.msra.mxu0 0.0
        %1288 = vmatprep.subr.mxu0 0.0
        %1289 = vmatpush1.msra.mxu0 0.0
        %1290 = vmatprep.subr.mxu0 0.0
        %1291 = vmatpush1.msra.mxu0 0.0
        %1292 = vmatprep.subr.mxu0 0.0
        %1293 = vmatpush1.msra.mxu0 0.0
        %1294 = vmatprep.subr.mxu0 0.0
        %1295 = vmatpush1.msra.mxu0 0.0
        %1296 = vmatprep.subr.mxu0 0.0
        %1297 = vmatpush1.msra.mxu0 0.0
        %1298 = vmatprep.subr.mxu0 0.0
        %1299 = vmatpush1.msra.mxu0 0.0
        %1300 = vmatprep.subr.mxu0 0.0
        %1301 = vmatpush1.msra.mxu0 0.0
        %1302 = vmatprep.mubr.f32.mxu0 0.0
        %1303 = vmatmul.mubr.f32.gmra.mrb[0].mxu0 %v1236
        %v1304 = vpop.f32.mrb[0].mxu0
        %v1305 = vadd.f32 0.0, %v1304
        %v1306 = vpop.f32.mrb[0].mxu0
        %1307 = vdwg.mxu0
        %v1308 = vsel %vm728, %v1305, -1000000.0
        %v1309 = vsel %vm730, %v1308, -inf
        %1310 = vmax.xlane.f32.xlu0 %v1309
        %v1311 = vpop.xlane.xlu0 %1310
        %v1312 = vsub.f32 %v1308, %v1311
        %v1313 = vmul.f32 %v1312, 1.442695
        %v1314 = vpow.pop %v1313
        %v1315 = vsel %vm730, %v1314, 0.0
        %1316 = vadd.xlane.f32.xlu0 %v1315
        %v1317 = vpop.xlane.xlu0 %1316
        %v1318 = vrcp.pop %v1317
        %v1319 = vmul.f32 %v1314, %v1318
        %v1320 = vld [vmem:[#allocation3] sm:$0xff]
        %1322 = vrot.lane.b32.xlu0 %v1320, 104
        %v1323 = vpop.permute.xlu0 %1322
        %v1326 = vsel %vm730, %v1319, 0
        %1328 = vmatprep.subr.mxu0 0.0
        %1329 = vmatpush1.msra.mxu0 %v1323
        %1330 = vmatprep.subr.mxu0 0.0
        %1331 = vmatpush1.msra.mxu0 0.0
        %1332 = vmatprep.subr.mxu0 0.0
        %1333 = vmatpush1.msra.mxu0 0.0
        %1334 = vmatprep.subr.mxu0 0.0
        %1335 = vmatpush1.msra.mxu0 0.0
        %1336 = vmatprep.subr.mxu0 0.0
        %1337 = vmatpush1.msra.mxu0 0.0
        %1338 = vmatprep.subr.mxu0 0.0
        %1339 = vmatpush1.msra.mxu0 0.0
        %1340 = vmatprep.subr.mxu0 0.0
        %1341 = vmatpush1.msra.mxu0 0.0
        %1342 = vmatprep.subr.mxu0 0.0
        %1343 = vmatpush1.msra.mxu0 0.0
        %1344 = vmatprep.subr.mxu0 0.0
        %1345 = vmatpush1.msra.mxu0 0.0
        %1346 = vmatprep.subr.mxu0 0.0
        %1347 = vmatpush1.msra.mxu0 0.0
        %1348 = vmatprep.subr.mxu0 0.0
        %1349 = vmatpush1.msra.mxu0 0.0
        %1350 = vmatprep.subr.mxu0 0.0
        %1351 = vmatpush1.msra.mxu0 0.0
        %1352 = vmatprep.subr.mxu0 0.0
        %1353 = vmatpush1.msra.mxu0 0.0
        %1354 = vmatprep.subr.mxu0 0.0
        %1355 = vmatpush1.msra.mxu0 0.0
        %1356 = vmatprep.subr.mxu0 0.0
        %1357 = vmatpush1.msra.mxu0 0.0
        %1358 = vmatprep.subr.mxu0 0.0
        %1359 = vmatpush1.msra.mxu0 0.0
        %1360 = vmatprep.subr.mxu0 0.0
        %1361 = vmatpush1.msra.mxu0 0.0
        %1362 = vmatprep.subr.mxu0 0.0
        %1363 = vmatpush1.msra.mxu0 0.0
        %1364 = vmatprep.subr.mxu0 0.0
        %1365 = vmatpush1.msra.mxu0 0.0
        %1366 = vmatprep.subr.mxu0 0.0
        %1367 = vmatpush1.msra.mxu0 0.0
        %1368 = vmatprep.subr.mxu0 0.0
        %1369 = vmatpush1.msra.mxu0 0.0
        %1370 = vmatprep.subr.mxu0 0.0
        %1371 = vmatpush1.msra.mxu0 0.0
        %1372 = vmatprep.subr.mxu0 0.0
        %1373 = vmatpush1.msra.mxu0 0.0
        %1374 = vmatprep.subr.mxu0 0.0
        %1375 = vmatpush1.msra.mxu0 0.0
        %1376 = vmatprep.subr.mxu0 0.0
        %1377 = vmatpush1.msra.mxu0 0.0
        %1378 = vmatprep.subr.mxu0 0.0
        %1379 = vmatpush1.msra.mxu0 0.0
        %1380 = vmatprep.subr.mxu0 0.0
        %1381 = vmatpush1.msra.mxu0 0.0
        %1382 = vmatprep.subr.mxu0 0.0
        %1383 = vmatpush1.msra.mxu0 0.0
        %1384 = vmatprep.subr.mxu0 0.0
        %1385 = vmatpush1.msra.mxu0 0.0
        %1386 = vmatprep.subr.mxu0 0.0
        %1387 = vmatpush1.msra.mxu0 0.0
        %1388 = vmatprep.subr.mxu0 0.0
        %1389 = vmatpush1.msra.mxu0 0.0
        %1390 = vmatprep.subr.mxu0 0.0
        %1391 = vmatpush1.msra.mxu0 0.0
        %1392 = vmatprep.mubr.f32.mxu0 0.0
        %1393 = vmatmul.mubr.f32.gmra.mrb[0].mxu0 %v1326
        %v1394 = vpop.f32.mrb[0].mxu0
        %v1395 = vadd.f32 0.0, %v1394
        %v1396 = vpop.f32.mrb[0].mxu0
        %1397 = vdwg.mxu0
        %1399 = vrot.lane.b32.xlu0 %v1395, 24
        %v1400 = vpop.permute.xlu0 %1399
        %vm1402 = vcmask 261312
        %1403 = vst.msk [vmem:[#allocation4] sm:$0xff] %vm1402, %v1400
        %v1404 = vld [vmem:[#allocation4] sm:$0xff]
        %v1405 = vld [vmem:[#allocation18] sm:$0xff]
        %v1406 = vld [vmem:[#allocation18 + $0x8] sm:$0xff]
        %v1407 = vld [vmem:[#allocation18 + $0x10] sm:$0xff]
        %v1408 = vld [vmem:[#allocation18 + $0x18] sm:$0xff]
        %v1410 = vsel %vm650, %v1404, 0
        %1412 = vmatprep.subr.mxu0 0.0
        %1413 = vmatpush1.msra.mxu0 %v1405
        %1414 = vmatprep.subr.mxu0 0.0
        %1415 = vmatpush1.msra.mxu0 %v1406
        %1416 = vmatprep.subr.mxu0 0.0
        %1417 = vmatpush1.msra.mxu0 %v1407
        %1418 = vmatprep.subr.mxu0 0.0
        %1419 = vmatpush1.msra.mxu0 %v1408
        %1420 = vmatprep.subr.mxu0 0.0
        %1421 = vmatpush1.msra.mxu0 0.0
        %1422 = vmatprep.subr.mxu0 0.0
        %1423 = vmatpush1.msra.mxu0 0.0
        %1424 = vmatprep.subr.mxu0 0.0
        %1425 = vmatpush1.msra.mxu0 0.0
        %1426 = vmatprep.subr.mxu0 0.0
        %1427 = vmatpush1.msra.mxu0 0.0
        %1428 = vmatprep.subr.mxu0 0.0
        %1429 = vmatpush1.msra.mxu0 0.0
        %1430 = vmatprep.subr.mxu0 0.0
        %1431 = vmatpush1.msra.mxu0 0.0
        %1432 = vmatprep.subr.mxu0 0.0
        %1433 = vmatpush1.msra.mxu0 0.0
        %1434 = vmatprep.subr.mxu0 0.0
        %1435 = vmatpush1.msra.mxu0 0.0
        %1436 = vmatprep.subr.mxu0 0.0
        %1437 = vmatpush1.msra.mxu0 0.0
        %1438 = vmatprep.subr.mxu0 0.0
        %1439 = vmatpush1.msra.mxu0 0.0
        %1440 = vmatprep.subr.mxu0 0.0
        %1441 = vmatpush1.msra.mxu0 0.0
        %1442 = vmatprep.subr.mxu0 0.0
        %1443 = vmatpush1.msra.mxu0 0.0
        %1444 = vmatprep.subr.mxu0 0.0
        %1445 = vmatpush1.msra.mxu0 0.0
        %1446 = vmatprep.subr.mxu0 0.0
        %1447 = vmatpush1.msra.mxu0 0.0
        %1448 = vmatprep.subr.mxu0 0.0
        %1449 = vmatpush1.msra.mxu0 0.0
        %1450 = vmatprep.subr.mxu0 0.0
        %1451 = vmatpush1.msra.mxu0 0.0
        %1452 = vmatprep.subr.mxu0 0.0
        %1453 = vmatpush1.msra.mxu0 0.0
        %1454 = vmatprep.subr.mxu0 0.0
        %1455 = vmatpush1.msra.mxu0 0.0
        %1456 = vmatprep.subr.mxu0 0.0
        %1457 = vmatpush1.msra.mxu0 0.0
        %1458 = vmatprep.subr.mxu0 0.0
        %1459 = vmatpush1.msra.mxu0 0.0
        %1460 = vmatprep.subr.mxu0 0.0
        %1461 = vmatpush1.msra.mxu0 0.0
        %1462 = vmatprep.subr.mxu0 0.0
        %1463 = vmatpush1.msra.mxu0 0.0
        %1464 = vmatprep.subr.mxu0 0.0
        %1465 = vmatpush1.msra.mxu0 0.0
        %1466 = vmatprep.subr.mxu0 0.0
        %1467 = vmatpush1.msra.mxu0 0.0
        %1468 = vmatprep.subr.mxu0 0.0
        %1469 = vmatpush1.msra.mxu0 0.0
        %1470 = vmatprep.subr.mxu0 0.0
        %1471 = vmatpush1.msra.mxu0 0.0
        %1472 = vmatprep.subr.mxu0 0.0
        %1473 = vmatpush1.msra.mxu0 0.0
        %1474 = vmatprep.subr.mxu0 0.0
        %1475 = vmatpush1.msra.mxu0 0.0
        %1476 = vmatprep.mubr.f32.mxu0 0.0
        %1477 = vmatmul.mubr.f32.gmra.mrb[0].mxu0 %v1410
        %v1478 = vpop.f32.mrb[0].mxu0
        %v1479 = vadd.f32 0.0, %v1478
        %v1480 = vpop.f32.mrb[0].mxu0
        %1481 = vdwg.mxu0
        %1482 = vst.msk [vmem:[%s444] sm:$0xff] %vm650, %v1479
        %s1483 = sand.u32 %s220, 1
        %s1484 = scalar_lea.sflag [#allocation9], %s1483
        %s1485 = sand.u32 %s220, 1
        %s1486 = smul.addr %s1485, 8
        %s1487 = scalar_lea.vmem [#allocation19], %s1486
        // Predicated region
        $region81: #{mha_forward.1} parent=47 // pred_check
          %p1488 = pneg %p230
        $region82: #{mha_forward.1} parent=47 // pred_check_branch
          %1490 = sbr.rel (%p1488) target = $region84
        $region83: #{mha_forward.1} parent=47 // pred_region
          %s1492 = ssub.s32 128, 128
          %1493 = vsyncadd %s1484, %s1492
          %s1494 = sadd.s32 %s39, %s38
          %s1495 = smul.addr %s1494, 128
          %s1496 = scalar_lea.hbm %s8, %s1495
          %s1498 = sshll.u32 %s1487, 4
          %s1499 = int_to_ptr.vmem [resolvable:$true] %s1498
          %1501 = dma.vmem_to_hbm [thread:$0]  %s1499, 128, %s1496, %s1484
        $region84: #{mha_forward.1} parent=47 // pred_fallthru
          _
      $region48: #{mha_forward.1} parent=5 // pred_fallthru
        _
      %p1502 = scmp.le.s32.totalorder 2, %s29
      // Predicated region
      $region85: #{mha_forward.1} parent=5 // pred_check
        %p1503 = pneg %p1502
      $region86: #{mha_forward.1} parent=5 // pred_check_branch
        %1505 = sbr.rel (%p1503) target = $region88
      $region87: #{mha_forward.1} parent=5 // pred_region
        %s1506 = ssub.s32 %s29, 2
        // Predicated region
        $region89: #{mha_forward.1} parent=87 // pred_check
          %p1507 = pneg %p236
        $region90: #{mha_forward.1} parent=87 // pred_check_branch
          %1509 = sbr.rel (%p1507) target = $region92
        $region91: #{mha_forward.1} parent=87 // pred_region
          %s1510 = sand.u32 %s221, 1
          %s1511 = scalar_lea.sflag [#allocation9], %s1510
          %s1512 = sand.u32 %s221, 1
          %s1513 = smul.addr %s1512, 8
          %s1514 = scalar_lea.vmem [#allocation19], %s1513
          %1515 = dma.done %s1511, 128
        $region92: #{mha_forward.1} parent=87 // pred_fallthru
          _
      $region88: #{mha_forward.1} parent=5 // pred_fallthru
        _
    $region6: #{mha_forward.1} parent=1 // loop_footer
      %s33 = sadd.s32 1, %s29
    $region7: #{mha_forward.1} parent=1 // loop_footer_branch
      %28 = sbr.rel target = $region3
    $region8: #{mha_forward.1} parent=1 // loop_exit
      _
    %1516 = vsyncpa [#allocation8], 1
    %s1517 = scalar_lea.sflag [#allocation8], 1
    %1518 = vsyncpa %s1517, 1
    %1519 = vsyncpa [#allocation11], 1
    %s1520 = scalar_lea.sflag [#allocation11], 1
    %1521 = vsyncpa %s1520, 1
    %1522 = vsyncpa [#allocation14], 1
    %1523 = vsyncpa [#allocation17], 1
    %1524 = vsyncpa [#allocation9], 1
    %s1525 = scalar_lea.sflag [#allocation9], 1
    %1526 = vsyncpa %s1525, 1

</llo_original>
